<compile_context>
chip_gen: v5e
topology: v5e:2x2
jax: 0.10.0
libtpu: 0.0.40
codegen_flags: <defaults>
</compile_context>

<pallas_src>
import functools

import jax
import jax.numpy as jnp
from jax.experimental import pallas as pl
from jax.experimental.pallas import tpu as pltpu

EPS = 1e-5
_WOFF = 8  # sublane-aligned column offset of the image interior inside the padded VMEM scratch


def _instnorm_relu(x):
    # x: (H, W, C) float32. InstanceNorm2d(affine=False): per-channel stats over the full spatial
    # extent (exact because each grid step holds the whole image), biased variance, eps=1e-5.
    mu = jnp.mean(x, axis=(0, 1), keepdims=True)
    var = jnp.mean(jnp.square(x - mu), axis=(0, 1), keepdims=True)
    return jnp.maximum((x - mu) * jax.lax.rsqrt(var + EPS), 0.0)


def _im2col_patches(hp_ref, H, W, Cin, stride):
    """The 9 (Ho*Wo, Cin) tap matrices of a 3x3/pad-1/stride-s conv, read from the padded scratch."""
    Ho, Wo = H // stride, W // stride
    patches = []
    for kh in range(3):
        for kw in range(3):
            if stride == 1:
                p = hp_ref[kh:kh + Ho, _WOFF - 1 + kw:_WOFF - 1 + kw + Wo, :]
            else:
                # strided taps directly from VMEM: conv stride handled in-kernel
                p = hp_ref[pl.ds(kh, Ho, stride=stride),
                           pl.ds(_WOFF - 1 + kw, Wo, stride=stride), :]
            patches.append(p.reshape(Ho * Wo, Cin))
    return patches


def _stage1_kernel(x_ref, w1_ref, wsc_ref, out1_ref, sc_ref, hp_ref,
                   *, H, W, Cin, Cout, stride):
    """relu(IN(x)); out1 = conv3x3_s(.)*scale ; shortcut = conv1x1_s(.)*scale  (scale folded in w)."""
    Ho, Wo = H // stride, W // stride

    # zero-filled scratch provides the conv halo (padding=1) without any HBM copy
    hp_ref[...] = jnp.zeros_like(hp_ref)
    h = _instnorm_relu(x_ref[0].astype(jnp.float32))
    hp_ref[1:H + 1, _WOFF:_WOFF + W, :] = h.astype(hp_ref.dtype)

    patches = _im2col_patches(hp_ref, H, W, Cin, stride)
    cols = jnp.concatenate(patches, axis=-1)                       # (Ho*Wo, 9*Cin) im2col
    out1 = jnp.dot(cols, w1_ref[...], preferred_element_type=jnp.float32)
    sc = jnp.dot(patches[4], wsc_ref[...],                         # center tap == x[::s, ::s]
                 preferred_element_type=jnp.float32)

    out1_ref[0] = out1.reshape(Ho, Wo, Cout).astype(out1_ref.dtype)
    sc_ref[0] = sc.astype(sc_ref.dtype)


def _stage2_kernel(x_ref, sc_ref, w2_ref, out_ref, hp_ref, *, H, W, C):
    """out = conv3x3_1(relu(IN(out1)))*scale + shortcut   (scale folded in w2)."""
    hp_ref[...] = jnp.zeros_like(hp_ref)
    h = _instnorm_relu(x_ref[0].astype(jnp.float32))
    hp_ref[1:H + 1, _WOFF:_WOFF + W, :] = h.astype(hp_ref.dtype)

    patches = _im2col_patches(hp_ref, H, W, C, 1)
    cols = jnp.concatenate(patches, axis=-1)                       # (H*W, 9*C)
    out = jnp.dot(cols, w2_ref[...], preferred_element_type=jnp.float32)
    out = out + sc_ref[0].astype(jnp.float32)                      # residual add (fused)
    out_ref[0] = out.astype(out_ref.dtype)


def basic_block_forward(x_nchw, w1_oihw, w2_oihw, wsc_oihw, stride, scaler_rate):
    scale = 1.0 / float(scaler_rate)                               # scaler(x) = x / rate
    N, Cin, H, W = x_nchw.shape
    Cout = w1_oihw.shape[0]
    assert H % stride == 0 and W % stride == 0, "H, W must be divisible by stride"
    Ho, Wo = H // stride, W // stride
    dt = x_nchw.dtype

    # Pre-pack weights once (tiny): HWIO order flattened to (9*Cin, Cout), scaler folded in.
    w1_mat = (jnp.transpose(w1_oihw, (2, 3, 1, 0)).reshape(9 * Cin, Cout) * scale).astype(dt)
    w2_mat = (jnp.transpose(w2_oihw, (2, 3, 1, 0)).reshape(9 * Cout, Cout) * scale).astype(dt)
    if wsc_oihw is None:
        # identity shortcut (stride==1, in_planes==planes): scaler(out) == (scale*I) @ out
        wsc_mat = (scale * jnp.eye(Cin, dtype=jnp.float32)).astype(dt)
    else:
        wsc_mat = (jnp.transpose(wsc_oihw[:, :, 0, 0], (1, 0)) * scale).astype(dt)

    # NCHW -> NHWC boundary glue (kept only to match the PyTorch interface).
    x = jnp.transpose(x_nchw, (0, 2, 3, 1))

    cparams = pltpu.CompilerParams(
        dimension_semantics=("parallel",),       # shard the batch grid axis across TCs (v7x megacore)
        vmem_limit_bytes=32 * 1024 * 1024,       # explicit scoped-VMEM budget, fits v5e/v6e/v7x
    )

    k1 = functools.partial(_stage1_kernel, H=H, W=W, Cin=Cin, Cout=Cout, stride=stride)
    out1, sc = pl.pallas_call(
        k1,
        grid=(N,),
        in_specs=[
            pl.BlockSpec((1, H, W, Cin), lambda n: (n, 0, 0, 0)),
            pl.BlockSpec((9 * Cin, Cout), lambda n: (0, 0)),
            pl.BlockSpec((Cin, Cout), lambda n: (0, 0)),
        ],
        out_specs=[
            pl.BlockSpec((1, Ho, Wo, Cout), lambda n: (n, 0, 0, 0)),
            pl.BlockSpec((1, Ho * Wo, Cout), lambda n: (n, 0, 0)),
        ],
        out_shape=[
            jax.ShapeDtypeStruct((N, Ho, Wo, Cout), dt),
            jax.ShapeDtypeStruct((N, Ho * Wo, Cout), dt),
        ],
        scratch_shapes=[pltpu.VMEM((H + 2, _WOFF + W + 8, Cin), dt)],
        compiler_params=cparams,
    )(x, w1_mat, wsc_mat)

    k2 = functools.partial(_stage2_kernel, H=Ho, W=Wo, C=Cout)
    out = pl.pallas_call(
        k2,
        grid=(N,),
        in_specs=[
            pl.BlockSpec((1, Ho, Wo, Cout), lambda n: (n, 0, 0, 0)),
            pl.BlockSpec((1, Ho * Wo, Cout), lambda n: (n, 0, 0)),
            pl.BlockSpec((9 * Cout, Cout), lambda n: (0, 0)),
        ],
        out_specs=pl.BlockSpec((1, Ho * Wo, Cout), lambda n: (n, 0, 0)),
        out_shape=jax.ShapeDtypeStruct((N, Ho * Wo, Cout), dt),
        scratch_shapes=[pltpu.VMEM((Ho + 2, _WOFF + Wo + 8, Cout), dt)],
        compiler_params=cparams,
    )(out1, sc, w2_mat)

    out = out.reshape(N, Ho, Wo, Cout)                             # free (trailing dims, row-major)
    return jnp.transpose(out, (0, 3, 1, 2))                        # NHWC -> NCHW (interface glue)


# ---------------------------------------------------------------------------
# Pure-JAX reference (validation only)
# ---------------------------------------------------------------------------
def ref_forward(x, w1, w2, wsc, stride, scaler_rate):
    scale = 1.0 / scaler_rate

    def inorm_relu(t):
        m = jnp.mean(t, axis=(2, 3), keepdims=True)
        v = jnp.mean(jnp.square(t - m), axis=(2, 3), keepdims=True)
        return jnp.maximum((t - m) * jax.lax.rsqrt(v + EPS), 0.0)

    def conv(t, w, s, pad):
        return jax.lax.conv_general_dilated(
            t, w, (s, s), [(pad, pad), (pad, pad)],
            dimension_numbers=("NCHW", "OIHW", "NCHW"),
            precision=jax.lax.Precision.HIGHEST)

    h = inorm_relu(x)
    sc = scale * conv(h, wsc, stride, 0)
    out = scale * conv(h, w1, stride, 1)
    out = inorm_relu(out)
    return scale * conv(out, w2, 1, 1) + sc


if __name__ == "__main__":
    N, in_planes, planes, H, W, stride = 2, 8, 16, 16, 16, 2
    scaler_rate = 0.5

    key = jax.random.PRNGKey(0)
    kx, k1, k2, k3 = jax.random.split(key, 4)

    def kaiming(k, shape):
        fan_in = shape[1] * shape[2] * shape[3]
        return jax.random.normal(k, shape, jnp.float32) * (2.0 / fan_in) ** 0.5

    x = jax.random.normal(kx, (N, in_planes, H, W), jnp.float32)
    w1 = kaiming(k1, (planes, in_planes, 3, 3))
    w2 = kaiming(k2, (planes, planes, 3, 3))
    w_sc = kaiming(k3, (planes, in_planes, 1, 1))

    out = basic_block_forward(x, w1, w2, w_sc, stride, scaler_rate)
    out = jax.block_until_ready(out)

    assert out.shape == (N, planes, H // stride, W // stride)
    ref = ref_forward(x, w1, w2, w_sc, stride, scaler_rate)
    # f32 MXU math vs HIGHEST-precision XLA reference: 1e-3 is ~100x above expected error,
    # tight enough to catch any indexing / layout bug (20x tighter than before).
    assert jnp.allclose(out, ref, rtol=1e-3, atol=1e-3), "mismatch vs JAX reference"

    print("KERNEL_OK")
</pallas_src>

<mosaic_0001>
module attributes {stable_mosaic.version = 11 : i64} {
  func.func @_stage1_kernel(%arg0: i32, %arg1: memref<1x16x16x8xf32, #tpu.memory_space<vmem>>, %arg2: memref<72x16xf32, #tpu.memory_space<vmem>>, %arg3: memref<8x16xf32, #tpu.memory_space<vmem>>, %arg4: memref<1x8x8x16xf32, #tpu.memory_space<vmem>>, %arg5: memref<1x64x16xf32, #tpu.memory_space<vmem>>, %arg6: memref<18x32x8xf32, #tpu.memory_space<vmem>>) attributes {dimension_semantics = [#tpu.dimension_semantics<parallel>], iteration_bounds = array<i64: 2>, scalar_prefetch = 0 : i64, scratch_operands = 1 : i64, tpu.core_type = #tpu.core_type<tc>, window_params = [{transform_indices = @transform_0, window_bounds = array<i64: 1, 16, 16, 8>}, {pipeline_mode = #tpu.pipeline_mode<synchronous>, transform_indices = @transform_1, window_bounds = array<i64: 72, 16>}, {pipeline_mode = #tpu.pipeline_mode<synchronous>, transform_indices = @transform_2, window_bounds = array<i64: 8, 16>}, {transform_indices = @transform_3, window_bounds = array<i64: 1, 8, 8, 16>}, {transform_indices = @transform_4, window_bounds = array<i64: 1, 64, 16>}]} {
    %cst = arith.constant 0.000000e+00 : f32
    %0 = vector.broadcast %cst : f32 to vector<18x32x8xf32>
    %c0 = arith.constant 0 : index
    %c0_0 = arith.constant 0 : index
    %c0_1 = arith.constant 0 : index
    %1 = vector.load %arg6[%c0, %c0_0, %c0_1] : memref<18x32x8xf32, #tpu.memory_space<vmem>>, vector<18x32x8xf32>
    tpu.vector_store %arg6[%c0, %c0_0, %c0_1], %0 {strides = array<i32>} : memref<18x32x8xf32, #tpu.memory_space<vmem>>, vector<18x32x8xf32>,
    %c0_2 = arith.constant 0 : index
    %c0_3 = arith.constant 0 : index
    %c0_4 = arith.constant 0 : index
    %c0_5 = arith.constant 0 : index
    %2 = vector.load %arg1[%c0_2, %c0_3, %c0_4, %c0_5] : memref<1x16x16x8xf32, #tpu.memory_space<vmem>>, vector<1x16x16x8xf32>
    %3 = vector.shape_cast %2 : vector<1x16x16x8xf32> to vector<16x16x8xf32>
    %cst_6 = arith.constant dense<0.000000e+00> : vector<8xf32>
    %4 = vector.multi_reduction <add>, %3, %cst_6 [0, 1] : vector<16x16x8xf32> to vector<8xf32>
    %5 = vector.shape_cast %4 : vector<8xf32> to vector<1x1x8xf32>
    %cst_7 = arith.constant 2.560000e+02 : f32
    %6 = vector.broadcast %cst_7 : f32 to vector<1x1x8xf32>
    %7 = arith.divf %5, %6 : vector<1x1x8xf32>
    %8 = vector.broadcast %7 : vector<1x1x8xf32> to vector<16x16x8xf32>
    %9 = arith.subf %3, %8 : vector<16x16x8xf32>
    %10 = arith.mulf %9, %9 : vector<16x16x8xf32>
    %cst_8 = arith.constant dense<0.000000e+00> : vector<8xf32>
    %11 = vector.multi_reduction <add>, %10, %cst_8 [0, 1] : vector<16x16x8xf32> to vector<8xf32>
    %12 = vector.shape_cast %11 : vector<8xf32> to vector<1x1x8xf32>
    %cst_9 = arith.constant 2.560000e+02 : f32
    %13 = vector.broadcast %cst_9 : f32 to vector<1x1x8xf32>
    %14 = arith.divf %12, %13 : vector<1x1x8xf32>
    %15 = vector.broadcast %7 : vector<1x1x8xf32> to vector<16x16x8xf32>
    %16 = arith.subf %3, %15 : vector<16x16x8xf32>
    %cst_10 = arith.constant 9.99999974E-6 : f32
    %17 = vector.broadcast %cst_10 : f32 to vector<1x1x8xf32>
    %18 = arith.addf %14, %17 : vector<1x1x8xf32>
    %19 = math.rsqrt %18 : vector<1x1x8xf32>
    %20 = vector.broadcast %19 : vector<1x1x8xf32> to vector<16x16x8xf32>
    %21 = arith.mulf %16, %20 : vector<16x16x8xf32>
    %cst_11 = arith.constant 0.000000e+00 : f32
    %22 = vector.broadcast %cst_11 : f32 to vector<16x16x8xf32>
    %23 = arith.maximumf %21, %22 : vector<16x16x8xf32>
    %c1 = arith.constant 1 : index
    %c8 = arith.constant 8 : index
    %c0_12 = arith.constant 0 : index
    %24 = vector.load %arg6[%c1, %c8, %c0_12] : memref<18x32x8xf32, #tpu.memory_space<vmem>>, vector<16x16x8xf32>
    tpu.vector_store %arg6[%c1, %c8, %c0_12], %23 {strides = array<i32>} : memref<18x32x8xf32, #tpu.memory_space<vmem>>, vector<16x16x8xf32>,
    %c0_13 = arith.constant 0 : index
    %c7 = arith.constant 7 : index
    %c0_14 = arith.constant 0 : index
    %25 = tpu.strided_load %arg6[%c0_13, %c7, %c0_14] {strides = array<i32: 2, 2, 1>} : memref<18x32x8xf32, #tpu.memory_space<vmem>>, vector<8x8x8xf32>
    %26 = vector.shape_cast %25 : vector<8x8x8xf32> to vector<64x8xf32>
    %c0_15 = arith.constant 0 : index
    %c8_16 = arith.constant 8 : index
    %c0_17 = arith.constant 0 : index
    %27 = tpu.strided_load %arg6[%c0_15, %c8_16, %c0_17] {strides = array<i32: 2, 2, 1>} : memref<18x32x8xf32, #tpu.memory_space<vmem>>, vector<8x8x8xf32>
    %28 = vector.shape_cast %27 : vector<8x8x8xf32> to vector<64x8xf32>
    %c0_18 = arith.constant 0 : index
    %c9 = arith.constant 9 : index
    %c0_19 = arith.constant 0 : index
    %29 = tpu.strided_load %arg6[%c0_18, %c9, %c0_19] {strides = array<i32: 2, 2, 1>} : memref<18x32x8xf32, #tpu.memory_space<vmem>>, vector<8x8x8xf32>
    %30 = vector.shape_cast %29 : vector<8x8x8xf32> to vector<64x8xf32>
    %c1_20 = arith.constant 1 : index
    %c7_21 = arith.constant 7 : index
    %c0_22 = arith.constant 0 : index
    %31 = tpu.strided_load %arg6[%c1_20, %c7_21, %c0_22] {strides = array<i32: 2, 2, 1>} : memref<18x32x8xf32, #tpu.memory_space<vmem>>, vector<8x8x8xf32>
    %32 = vector.shape_cast %31 : vector<8x8x8xf32> to vector<64x8xf32>
    %c1_23 = arith.constant 1 : index
    %c8_24 = arith.constant 8 : index
    %c0_25 = arith.constant 0 : index
    %33 = tpu.strided_load %arg6[%c1_23, %c8_24, %c0_25] {strides = array<i32: 2, 2, 1>} : memref<18x32x8xf32, #tpu.memory_space<vmem>>, vector<8x8x8xf32>
    %34 = vector.shape_cast %33 : vector<8x8x8xf32> to vector<64x8xf32>
    %c1_26 = arith.constant 1 : index
    %c9_27 = arith.constant 9 : index
    %c0_28 = arith.constant 0 : index
    %35 = tpu.strided_load %arg6[%c1_26, %c9_27, %c0_28] {strides = array<i32: 2, 2, 1>} : memref<18x32x8xf32, #tpu.memory_space<vmem>>, vector<8x8x8xf32>
    %36 = vector.shape_cast %35 : vector<8x8x8xf32> to vector<64x8xf32>
    %c2 = arith.constant 2 : index
    %c7_29 = arith.constant 7 : index
    %c0_30 = arith.constant 0 : index
    %37 = tpu.strided_load %arg6[%c2, %c7_29, %c0_30] {strides = array<i32: 2, 2, 1>} : memref<18x32x8xf32, #tpu.memory_space<vmem>>, vector<8x8x8xf32>
    %38 = vector.shape_cast %37 : vector<8x8x8xf32> to vector<64x8xf32>
    %c2_31 = arith.constant 2 : index
    %c8_32 = arith.constant 8 : index
    %c0_33 = arith.constant 0 : index
    %39 = tpu.strided_load %arg6[%c2_31, %c8_32, %c0_33] {strides = array<i32: 2, 2, 1>} : memref<18x32x8xf32, #tpu.memory_space<vmem>>, vector<8x8x8xf32>
    %40 = vector.shape_cast %39 : vector<8x8x8xf32> to vector<64x8xf32>
    %c2_34 = arith.constant 2 : index
    %c9_35 = arith.constant 9 : index
    %c0_36 = arith.constant 0 : index
    %41 = tpu.strided_load %arg6[%c2_34, %c9_35, %c0_36] {strides = array<i32: 2, 2, 1>} : memref<18x32x8xf32, #tpu.memory_space<vmem>>, vector<8x8x8xf32>
    %42 = vector.shape_cast %41 : vector<8x8x8xf32> to vector<64x8xf32>
    %43 = tpu.concatenate %26, %28, %30, %32, %34, %36, %38, %40, %42 in 1 : vector<64x8xf32>, vector<64x8xf32>, vector<64x8xf32>, vector<64x8xf32>, vector<64x8xf32>, vector<64x8xf32>, vector<64x8xf32>, vector<64x8xf32>, vector<64x8xf32> -> vector<64x72xf32>
    %c0_37 = arith.constant 0 : index
    %c0_38 = arith.constant 0 : index
    %44 = vector.load %arg2[%c0_37, %c0_38] : memref<72x16xf32, #tpu.memory_space<vmem>>, vector<72x16xf32>
    %cst_39 = arith.constant dense<0.000000e+00> : vector<64x16xf32>
    %45 = tpu.matmul %43, %44, %cst_39 {dimension_numbers = #tpu.dot_dimension_numbers<[1], [0], [0], [1], [0, 0, 1, 1], [], []>} : vector<64x72xf32>, vector<72x16xf32>, vector<64x16xf32> -> vector<64x16xf32>
    %c0_40 = arith.constant 0 : index
    %c0_41 = arith.constant 0 : index
    %46 = vector.load %arg3[%c0_40, %c0_41] : memref<8x16xf32, #tpu.memory_space<vmem>>, vector<8x16xf32>
    %cst_42 = arith.constant dense<0.000000e+00> : vector<64x16xf32>
    %47 = tpu.matmul %34, %46, %cst_42 {dimension_numbers = #tpu.dot_dimension_numbers<[1], [0], [0], [1], [0, 0, 1, 1], [], []>} : vector<64x8xf32>, vector<8x16xf32>, vector<64x16xf32> -> vector<64x16xf32>
    %48 = vector.shape_cast %45 : vector<64x16xf32> to vector<8x8x16xf32>
    %c0_43 = arith.constant 0 : index
    %c0_44 = arith.constant 0 : index
    %c0_45 = arith.constant 0 : index
    %c0_46 = arith.constant 0 : index
    %49 = vector.load %arg4[%c0_43, %c0_44, %c0_45, %c0_46] : memref<1x8x8x16xf32, #tpu.memory_space<vmem>>, vector<1x8x8x16xf32>
    %50 = vector.shape_cast %49 : vector<1x8x8x16xf32> to vector<8x8x16xf32>
    %51 = vector.shape_cast %48 : vector<8x8x16xf32> to vector<1x8x8x16xf32>
    tpu.vector_store %arg4[%c0_43, %c0_44, %c0_45, %c0_46], %51 {strides = array<i32>} : memref<1x8x8x16xf32, #tpu.memory_space<vmem>>, vector<1x8x8x16xf32>,
    %c0_47 = arith.constant 0 : index
    %c0_48 = arith.constant 0 : index
    %c0_49 = arith.constant 0 : index
    %52 = vector.load %arg5[%c0_47, %c0_48, %c0_49] : memref<1x64x16xf32, #tpu.memory_space<vmem>>, vector<1x64x16xf32>
    %53 = vector.shape_cast %52 : vector<1x64x16xf32> to vector<64x16xf32>
    %54 = vector.shape_cast %47 : vector<64x16xf32> to vector<1x64x16xf32>
    tpu.vector_store %arg5[%c0_47, %c0_48, %c0_49], %54 {strides = array<i32>} : memref<1x64x16xf32, #tpu.memory_space<vmem>>, vector<1x64x16xf32>,
    return
  }
  func.func @transform_0(%arg0: i32) -> (i32, i32, i32, i32) {
    %c0_i32 = arith.constant 0 : i32
    %c0_i32_0 = arith.constant 0 : i32
    %c0_i32_1 = arith.constant 0 : i32
    %c0_i32_2 = arith.constant 0 : i32
    return %arg0, %c0_i32, %c0_i32_0, %c0_i32_1 : i32, i32, i32, i32
  }
  func.func @transform_1(%arg0: i32) -> (i32, i32) {
    %c0_i32 = arith.constant 0 : i32
    %c0_i32_0 = arith.constant 0 : i32
    %c0_i32_1 = arith.constant 0 : i32
    return %c0_i32, %c0_i32_0 : i32, i32
  }
  func.func @transform_2(%arg0: i32) -> (i32, i32) {
    %c0_i32 = arith.constant 0 : i32
    %c0_i32_0 = arith.constant 0 : i32
    %c0_i32_1 = arith.constant 0 : i32
    return %c0_i32, %c0_i32_0 : i32, i32
  }
  func.func @transform_3(%arg0: i32) -> (i32, i32, i32, i32) {
    %c0_i32 = arith.constant 0 : i32
    %c0_i32_0 = arith.constant 0 : i32
    %c0_i32_1 = arith.constant 0 : i32
    %c0_i32_2 = arith.constant 0 : i32
    return %arg0, %c0_i32, %c0_i32_0, %c0_i32_1 : i32, i32, i32, i32
  }
  func.func @transform_4(%arg0: i32) -> (i32, i32, i32) {
    %c0_i32 = arith.constant 0 : i32
    %c0_i32_0 = arith.constant 0 : i32
    %c0_i32_1 = arith.constant 0 : i32
    return %arg0, %c0_i32, %c0_i32_0 : i32, i32, i32
  }
}

</mosaic_0001>

<llo_original>
// kernel: tpu_custom_call.1
$region0: #{tpu_custom_call.1}
  #allocation0 [shape = 'u32[]', space=smem, size = 0x4, offset = 0x4, fixed_abs, tag = 'smem constant byte address 0x4 - core index']
  #allocation1 [shape = 'u32[72,128]{1,0:T(1,128)}', space=vmem, size = 0x9000, scoped, tag = 'internal scratch']
  #allocation2 [shape = 'f32[18,32,8]{2,1,0:T(8,128)}', space=vmem, size = 0x48000, scoped, tag = 'scratch operand']
  %s0 = inlined_call_operand.vmem [shape: f32[2,16,16,8], index: 0, kind: input, shape index: {}]
  %s1 = inlined_call_operand.vmem [shape: f32[72,16], index: 1, kind: input, shape index: {}]
  %s2 = inlined_call_operand.vmem [shape: f32[8,16], index: 2, kind: input, shape index: {}]
  %s3 = inlined_call_operand.hbm [shape: f32[2,8,8,16], index: 3, kind: output, shape index: {0}]
  %s4 = inlined_call_operand.vmem [shape: f32[2,64,16], index: 4, kind: output, shape index: {1}]
  %5 = xla_tuple %s3, %s4
  %s6 = sld [smem:[#allocation0]]
  $region53: #{tpu_custom_call.1} parent=0
    _
  %s8 = ssub.s32 1, %s6
  %s9 = scalar_select 0, %s8, %s6
  $region1: #{tpu_custom_call.1} parent=0
    #allocation3 [shape = 'u8[65536]{0}', space=vmem, size = 0x10000, scoped, tag = 'output window, operand 0']
    #allocation4 [shape = 's32[2]{0}', space=sflag, size = 0x8, scoped, tag = 'scoped memory for tpu_custom_call.1']
    %10 = vsyncpa [#allocation4], 0
    %s11 = scalar_lea.sflag [#allocation4], 1
    %12 = vsyncpa %s11, 0
    loop: start=0, step=1, limit=4
    $region2: #{tpu_custom_call.1} parent=1 // loop_pre_header
      _
    $region3: #{tpu_custom_call.1} parent=1 // loop_header
      %s14 = sphi 0, %s18
      %p15 = scmp.ge.s32.totalorder %s14, 4
      %s24 = sphi 0, %s26
      %s27 = sphi 0, %s24
      %s28 = sphi 0, %s27
      %s44 = sphi 0, %s28
      %s48 = sphi 0, %s48
      %s50 = sphi 0, %s48
      %s51 = sphi 0, %s50
      %s65 = sphi 0, %s51
      %s69 = sphi 0, %s69
      %s71 = sphi 0, %s69
      %s72 = sphi 0, %s71
      %s86 = sphi 0, %s72
      %s92 = sphi 0, %s94
      %s95 = sphi 0, %s92
      %s96 = sphi 0, %s95
      %s112 = sphi 0, %s96
      %s118 = sphi 0, %s120
      %s121 = sphi 0, %s118
      %s122 = sphi 0, %s121
      %s138 = sphi 0, %s122
    $region4: #{tpu_custom_call.1} parent=1 // loop_header_branch
      %17 = sbr.rel (%p15) target = $region8
    $region5: #{tpu_custom_call.1} parent=1 // loop_body
      %s19 = ssub.s32 %s14, 1
      %s20 = ssub.s32 %s14, 2
      %s21 = sadd.s32 %s14, 1
      %s22 = ssub.s32 %s14, %s21
      %p23 = scmp.eq.s32.totalorder %s22, 0
      %s25 = sadd.s32 %s24, 1
      %s26 = scalar_select %p23, %s24, %s25
      %p29 = pneg %p23
      %p30 = scmp.eq.s32.totalorder %s14, 1
      %p31 = por %p29, %p30
      %p32 = scmp.ne.s32.totalorder %s24, %s27
      %p33 = scmp.eq.s32.totalorder %s14, 0
      %p34 = por %p32, %p33
      %p35 = scmp.ne.s32.totalorder %s24, %s27
      %p36 = scmp.eq.s32.totalorder %s19, 1
      %p37 = por %p35, %p36
      %p38 = scmp.ne.s32.totalorder %s27, %s28
      %p39 = scmp.eq.s32.totalorder %s19, 0
      %p40 = por %p38, %p39
      %p41 = scmp.ne.s32.totalorder %s27, %s28
      %p42 = scmp.eq.s32.totalorder %s20, 1
      %p43 = por %p41, %p42
      %p45 = scmp.ne.s32.totalorder %s28, %s44
      %p46 = scmp.eq.s32.totalorder %s20, 0
      %p47 = por %p45, %p46
      %s49 = sadd.s32 %s48, 1
      %p52 = scmp.eq.s32.totalorder %s14, 1
      %p53 = scmp.ne.s32.totalorder %s48, %s50
      %p54 = scmp.eq.s32.totalorder %s14, 0
      %p55 = por %p53, %p54
      %p56 = scmp.ne.s32.totalorder %s48, %s50
      %p57 = scmp.eq.s32.totalorder %s19, 1
      %p58 = por %p56, %p57
      %p59 = scmp.ne.s32.totalorder %s50, %s51
      %p60 = scmp.eq.s32.totalorder %s19, 0
      %p61 = por %p59, %p60
      %p62 = scmp.ne.s32.totalorder %s50, %s51
      %p63 = scmp.eq.s32.totalorder %s20, 1
      %p64 = por %p62, %p63
      %p66 = scmp.ne.s32.totalorder %s51, %s65
      %p67 = scmp.eq.s32.totalorder %s20, 0
      %p68 = por %p66, %p67
      %s70 = sadd.s32 %s69, 1
      %p73 = scmp.eq.s32.totalorder %s14, 1
      %p74 = scmp.ne.s32.totalorder %s69, %s71
      %p75 = scmp.eq.s32.totalorder %s14, 0
      %p76 = por %p74, %p75
      %p77 = scmp.ne.s32.totalorder %s69, %s71
      %p78 = scmp.eq.s32.totalorder %s19, 1
      %p79 = por %p77, %p78
      %p80 = scmp.ne.s32.totalorder %s71, %s72
      %p81 = scmp.eq.s32.totalorder %s19, 0
      %p82 = por %p80, %p81
      %p83 = scmp.ne.s32.totalorder %s71, %s72
      %p84 = scmp.eq.s32.totalorder %s20, 1
      %p85 = por %p83, %p84
      %p87 = scmp.ne.s32.totalorder %s72, %s86
      %p88 = scmp.eq.s32.totalorder %s20, 0
      %p89 = por %p87, %p88
      %s90 = ssub.s32 %s14, %s21
      %p91 = scmp.eq.s32.totalorder %s90, 0
      %s93 = sadd.s32 %s92, 1
      %s94 = scalar_select %p91, %s92, %s93
      %p97 = pneg %p91
      %p98 = scmp.eq.s32.totalorder %s14, 1
      %p99 = por %p97, %p98
      %p100 = scmp.ne.s32.totalorder %s92, %s95
      %p101 = scmp.eq.s32.totalorder %s14, 0
      %p102 = por %p100, %p101
      %p103 = scmp.ne.s32.totalorder %s92, %s95
      %p104 = scmp.eq.s32.totalorder %s19, 1
      %p105 = por %p103, %p104
      %p106 = scmp.ne.s32.totalorder %s95, %s96
      %p107 = scmp.eq.s32.totalorder %s19, 0
      %p108 = por %p106, %p107
      %p109 = scmp.ne.s32.totalorder %s95, %s96
      %p110 = scmp.eq.s32.totalorder %s20, 1
      %p111 = por %p109, %p110
      %p113 = scmp.ne.s32.totalorder %s96, %s112
      %p114 = scmp.eq.s32.totalorder %s20, 0
      %p115 = por %p113, %p114
      %s116 = ssub.s32 %s14, %s21
      %p117 = scmp.eq.s32.totalorder %s116, 0
      %s119 = sadd.s32 %s118, 1
      %s120 = scalar_select %p117, %s118, %s119
      %p123 = pneg %p117
      %p124 = scmp.eq.s32.totalorder %s14, 1
      %p125 = por %p123, %p124
      %p126 = scmp.ne.s32.totalorder %s118, %s121
      %p127 = scmp.eq.s32.totalorder %s14, 0
      %p128 = por %p126, %p127
      %p129 = scmp.ne.s32.totalorder %s118, %s121
      %p130 = scmp.eq.s32.totalorder %s19, 1
      %p131 = por %p129, %p130
      %p132 = scmp.ne.s32.totalorder %s121, %s122
      %p133 = scmp.eq.s32.totalorder %s19, 0
      %p134 = por %p132, %p133
      %p135 = scmp.ne.s32.totalorder %s121, %s122
      %p136 = scmp.eq.s32.totalorder %s20, 1
      %p137 = por %p135, %p136
      %p139 = scmp.ne.s32.totalorder %s122, %s138
      %p140 = scmp.eq.s32.totalorder %s20, 0
      %p141 = por %p139, %p140
      %p142 = scmp.le.s32.totalorder 1, %s14
      %p143 = scmp.lt.s32.totalorder %s14, 3
      %p144 = pnand %p142, %p143
      %p145 = pneg %p144
      // Predicated region
      $region9: #{tpu_custom_call.1} parent=5 // pred_check
        _
      $region10: #{tpu_custom_call.1} parent=5 // pred_check_branch
        %147 = sbr.rel (%p144) target = $region12
      $region11: #{tpu_custom_call.1} parent=5 // pred_region
        %s148 = ssub.s32 %s14, 1
        // Predicated region
        $region13: #{tpu_custom_call.1} parent=11 // pred_check
          %p149 = pneg %p61
        $region14: #{tpu_custom_call.1} parent=11 // pred_check_branch
          %151 = sbr.rel (%p149) target = $region16
        $region15: #{tpu_custom_call.1} parent=11 // pred_region
          _
        $region16: #{tpu_custom_call.1} parent=11 // pred_fallthru
          _
        // Predicated region
        $region17: #{tpu_custom_call.1} parent=11 // pred_check
          %p152 = pneg %p82
        $region18: #{tpu_custom_call.1} parent=11 // pred_check_branch
          %154 = sbr.rel (%p152) target = $region20
        $region19: #{tpu_custom_call.1} parent=11 // pred_region
          _
        $region20: #{tpu_custom_call.1} parent=11 // pred_fallthru
          _
      $region12: #{tpu_custom_call.1} parent=5 // pred_fallthru
        _
      %p155 = scmp.lt.s32.totalorder %s14, 2
      // Predicated region
      $region21: #{tpu_custom_call.1} parent=5 // pred_check
        %p156 = pneg %p155
      $region22: #{tpu_custom_call.1} parent=5 // pred_check_branch
        %158 = sbr.rel (%p156) target = $region24
      $region23: #{tpu_custom_call.1} parent=5 // pred_region
        // Predicated region
        $region25: #{tpu_custom_call.1} parent=23 // pred_check
          %p159 = pneg %p34
        $region26: #{tpu_custom_call.1} parent=23 // pred_check_branch
          %161 = sbr.rel (%p159) target = $region28
        $region27: #{tpu_custom_call.1} parent=23 // pred_region
          %p162 = scmp.lt.s32.totalorder %s14, 1
          %s163 = scalar_select %p162, %s14, 1
          %s164 = smul.addr %s163, 32
          %s165 = smul.addr %s164, 8
          %s166 = scalar_lea.vmem %s0, %s165
        $region28: #{tpu_custom_call.1} parent=23 // pred_fallthru
          _
      $region24: #{tpu_custom_call.1} parent=5 // pred_fallthru
        _
      %p167 = scmp.le.s32.totalorder 1, %s14
      %p168 = scmp.lt.s32.totalorder %s14, 3
      %p169 = pnand %p167, %p168
      %p170 = pneg %p169
      // Predicated region
      $region29: #{tpu_custom_call.1} parent=5 // pred_check
        _
      $region30: #{tpu_custom_call.1} parent=5 // pred_check_branch
        %172 = sbr.rel (%p169) target = $region32
      $region31: #{tpu_custom_call.1} parent=5 // pred_region
        %s173 = ssub.s32 %s14, 1
        %p174 = scmp.lt.s32.totalorder %s19, 1
        %s175 = scalar_select %p174, %s19, 1
        %s176 = smul.addr %s175, 32
        %s177 = smul.addr %s176, 8
        %s178 = scalar_lea.vmem %s0, %s177
        %p179 = pneg %p40
        %p180 = pneg %p37
        %p181 = pneg %p61
        %p182 = pneg %p58
        %p183 = pneg %p82
        %p184 = pneg %p79
        %p185 = pneg %p108
        %p186 = pneg %p105
        %s187 = sand.u32 %s95, 1
        %s188 = scalar_lea.sflag [#allocation4], %s187
        %s189 = sand.u32 %s95, 1
        %s190 = smul.addr %s189, 64
        %s191 = scalar_lea.vmem [#allocation3], %s190
        %p192 = pneg %p134
        %p193 = pneg %p131
        %p194 = scmp.lt.s32.totalorder %s19, 1
        %s195 = scalar_select %p194, %s19, 1
        %s196 = smul.addr %s195, 8
        %s197 = smul.addr %s196, 8
        %s198 = scalar_lea.vmem %s4, %s197
        %p199 = scmp.lt.s32.totalorder %s19, 1
        %s200 = scalar_select %p199, %s19, 1
        %s201 = smul.addr %s200, 32
        %s202 = smul.addr %s201, 8
        %s203 = scalar_lea.vmem %s0, %s202
        %p204 = scmp.lt.s32.totalorder %s19, 1
        %s205 = scalar_select %p204, %s19, 1
        %s206 = smul.addr %s205, 8
        %s207 = smul.addr %s206, 8
        %s208 = scalar_lea.vmem %s4, %s207
        %vm209 = vcmask 64512
        %210 = vst.msk [vmem:[#allocation2] sm:$0xff] %vm209, 0.0
        %211 = vst.msk [vmem:[#allocation2 + $0x8] sm:$0xff] %vm209, 0.0
        %212 = vst.msk [vmem:[#allocation2 + $0x10] sm:$0xff] %vm209, 0.0
        %213 = vst.msk [vmem:[#allocation2 + $0x18] sm:$0xff] %vm209, 0.0
        %214 = vst.msk [vmem:[#allocation2 + $0x20] sm:$0xff] %vm209, 0.0
        %215 = vst.msk [vmem:[#allocation2 + $0x28] sm:$0xff] %vm209, 0.0
        %216 = vst.msk [vmem:[#allocation2 + $0x30] sm:$0xff] %vm209, 0.0
        %217 = vst.msk [vmem:[#allocation2 + $0x38] sm:$0xff] %vm209, 0.0
        %218 = vst.msk [vmem:[#allocation2 + $0x40] sm:$0xff] %vm209, 0.0
        %219 = vst.msk [vmem:[#allocation2 + $0x48] sm:$0xff] %vm209, 0.0
        %220 = vst.msk [vmem:[#allocation2 + $0x50] sm:$0xff] %vm209, 0.0
        %221 = vst.msk [vmem:[#allocation2 + $0x58] sm:$0xff] %vm209, 0.0
        %222 = vst.msk [vmem:[#allocation2 + $0x60] sm:$0xff] %vm209, 0.0
        %223 = vst.msk [vmem:[#allocation2 + $0x68] sm:$0xff] %vm209, 0.0
        %224 = vst.msk [vmem:[#allocation2 + $0x70] sm:$0xff] %vm209, 0.0
        %225 = vst.msk [vmem:[#allocation2 + $0x78] sm:$0xff] %vm209, 0.0
        %226 = vst.msk [vmem:[#allocation2 + $0x80] sm:$0xff] %vm209, 0.0
        %227 = vst.msk [vmem:[#allocation2 + $0x88] sm:$0xff] %vm209, 0.0
        %228 = vst.msk [vmem:[#allocation2 + $0x90] sm:$0xff] %vm209, 0.0
        %229 = vst.msk [vmem:[#allocation2 + $0x98] sm:$0xff] %vm209, 0.0
        %230 = vst.msk [vmem:[#allocation2 + $0xa0] sm:$0xff] %vm209, 0.0
        %231 = vst.msk [vmem:[#allocation2 + $0xa8] sm:$0xff] %vm209, 0.0
        %232 = vst.msk [vmem:[#allocation2 + $0xb0] sm:$0xff] %vm209, 0.0
        %233 = vst.msk [vmem:[#allocation2 + $0xb8] sm:$0xff] %vm209, 0.0
        %234 = vst.msk [vmem:[#allocation2 + $0xc0] sm:$0xff] %vm209, 0.0
        %235 = vst.msk [vmem:[#allocation2 + $0xc8] sm:$0xff] %vm209, 0.0
        %236 = vst.msk [vmem:[#allocation2 + $0xd0] sm:$0xff] %vm209, 0.0
        %237 = vst.msk [vmem:[#allocation2 + $0xd8] sm:$0xff] %vm209, 0.0
        %238 = vst.msk [vmem:[#allocation2 + $0xe0] sm:$0xff] %vm209, 0.0
        %239 = vst.msk [vmem:[#allocation2 + $0xe8] sm:$0xff] %vm209, 0.0
        %240 = vst.msk [vmem:[#allocation2 + $0xf0] sm:$0xff] %vm209, 0.0
        %241 = vst.msk [vmem:[#allocation2 + $0xf8] sm:$0xff] %vm209, 0.0
        %242 = vst.msk [vmem:[#allocation2 + $0x100] sm:$0xff] %vm209, 0.0
        %243 = vst.msk [vmem:[#allocation2 + $0x108] sm:$0xff] %vm209, 0.0
        %244 = vst.msk [vmem:[#allocation2 + $0x110] sm:$0xff] %vm209, 0.0
        %245 = vst.msk [vmem:[#allocation2 + $0x118] sm:$0xff] %vm209, 0.0
        %246 = vst.msk [vmem:[#allocation2 + $0x120] sm:$0xff] %vm209, 0.0
        %247 = vst.msk [vmem:[#allocation2 + $0x128] sm:$0xff] %vm209, 0.0
        %248 = vst.msk [vmem:[#allocation2 + $0x130] sm:$0xff] %vm209, 0.0
        %249 = vst.msk [vmem:[#allocation2 + $0x138] sm:$0xff] %vm209, 0.0
        %250 = vst.msk [vmem:[#allocation2 + $0x140] sm:$0xff] %vm209, 0.0
        %251 = vst.msk [vmem:[#allocation2 + $0x148] sm:$0xff] %vm209, 0.0
        %252 = vst.msk [vmem:[#allocation2 + $0x150] sm:$0xff] %vm209, 0.0
        %253 = vst.msk [vmem:[#allocation2 + $0x158] sm:$0xff] %vm209, 0.0
        %254 = vst.msk [vmem:[#allocation2 + $0x160] sm:$0xff] %vm209, 0.0
        %255 = vst.msk [vmem:[#allocation2 + $0x168] sm:$0xff] %vm209, 0.0
        %256 = vst.msk [vmem:[#allocation2 + $0x170] sm:$0xff] %vm209, 0.0
        %257 = vst.msk [vmem:[#allocation2 + $0x178] sm:$0xff] %vm209, 0.0
        %258 = vst.msk [vmem:[#allocation2 + $0x180] sm:$0xff] %vm209, 0.0
        %259 = vst.msk [vmem:[#allocation2 + $0x188] sm:$0xff] %vm209, 0.0
        %260 = vst.msk [vmem:[#allocation2 + $0x190] sm:$0xff] %vm209, 0.0
        %261 = vst.msk [vmem:[#allocation2 + $0x198] sm:$0xff] %vm209, 0.0
        %262 = vst.msk [vmem:[#allocation2 + $0x1a0] sm:$0xff] %vm209, 0.0
        %263 = vst.msk [vmem:[#allocation2 + $0x1a8] sm:$0xff] %vm209, 0.0
        %264 = vst.msk [vmem:[#allocation2 + $0x1b0] sm:$0xff] %vm209, 0.0
        %265 = vst.msk [vmem:[#allocation2 + $0x1b8] sm:$0xff] %vm209, 0.0
        %266 = vst.msk [vmem:[#allocation2 + $0x1c0] sm:$0xff] %vm209, 0.0
        %267 = vst.msk [vmem:[#allocation2 + $0x1c8] sm:$0xff] %vm209, 0.0
        %268 = vst.msk [vmem:[#allocation2 + $0x1d0] sm:$0xff] %vm209, 0.0
        %269 = vst.msk [vmem:[#allocation2 + $0x1d8] sm:$0xff] %vm209, 0.0
        %270 = vst.msk [vmem:[#allocation2 + $0x1e0] sm:$0xff] %vm209, 0.0
        %271 = vst.msk [vmem:[#allocation2 + $0x1e8] sm:$0xff] %vm209, 0.0
        %272 = vst.msk [vmem:[#allocation2 + $0x1f0] sm:$0xff] %vm209, 0.0
        %273 = vst.msk [vmem:[#allocation2 + $0x1f8] sm:$0xff] %vm209, 0.0
        %274 = vst.msk [vmem:[#allocation2 + $0x200] sm:$0xff] %vm209, 0.0
        %275 = vst.msk [vmem:[#allocation2 + $0x208] sm:$0xff] %vm209, 0.0
        %276 = vst.msk [vmem:[#allocation2 + $0x210] sm:$0xff] %vm209, 0.0
        %277 = vst.msk [vmem:[#allocation2 + $0x218] sm:$0xff] %vm209, 0.0
        %278 = vst.msk [vmem:[#allocation2 + $0x220] sm:$0xff] %vm209, 0.0
        %279 = vst.msk [vmem:[#allocation2 + $0x228] sm:$0xff] %vm209, 0.0
        %280 = vst.msk [vmem:[#allocation2 + $0x230] sm:$0xff] %vm209, 0.0
        %281 = vst.msk [vmem:[#allocation2 + $0x238] sm:$0xff] %vm209, 0.0
        %v282 = vld [vmem:[%s203] sm:$0xff]
        %v283 = vld [vmem:[%s203 + $0x8] sm:$0xff]
        %v284 = vld [vmem:[%s203 + $0x10] sm:$0xff]
        %v285 = vld [vmem:[%s203 + $0x18] sm:$0xff]
        %v286 = vld [vmem:[%s203 + $0x20] sm:$0xff]
        %v287 = vld [vmem:[%s203 + $0x28] sm:$0xff]
        %v288 = vld [vmem:[%s203 + $0x30] sm:$0xff]
        %v289 = vld [vmem:[%s203 + $0x38] sm:$0xff]
        %v290 = vld [vmem:[%s203 + $0x40] sm:$0xff]
        %v291 = vld [vmem:[%s203 + $0x48] sm:$0xff]
        %v292 = vld [vmem:[%s203 + $0x50] sm:$0xff]
        %v293 = vld [vmem:[%s203 + $0x58] sm:$0xff]
        %v294 = vld [vmem:[%s203 + $0x60] sm:$0xff]
        %v295 = vld [vmem:[%s203 + $0x68] sm:$0xff]
        %v296 = vld [vmem:[%s203 + $0x70] sm:$0xff]
        %v297 = vld [vmem:[%s203 + $0x78] sm:$0xff]
        %v298 = vld [vmem:[%s203 + $0x80] sm:$0xff]
        %v299 = vld [vmem:[%s203 + $0x88] sm:$0xff]
        %v300 = vld [vmem:[%s203 + $0x90] sm:$0xff]
        %v301 = vld [vmem:[%s203 + $0x98] sm:$0xff]
        %v302 = vld [vmem:[%s203 + $0xa0] sm:$0xff]
        %v303 = vld [vmem:[%s203 + $0xa8] sm:$0xff]
        %v304 = vld [vmem:[%s203 + $0xb0] sm:$0xff]
        %v305 = vld [vmem:[%s203 + $0xb8] sm:$0xff]
        %v306 = vld [vmem:[%s203 + $0xc0] sm:$0xff]
        %v307 = vld [vmem:[%s203 + $0xc8] sm:$0xff]
        %v308 = vld [vmem:[%s203 + $0xd0] sm:$0xff]
        %v309 = vld [vmem:[%s203 + $0xd8] sm:$0xff]
        %v310 = vld [vmem:[%s203 + $0xe0] sm:$0xff]
        %v311 = vld [vmem:[%s203 + $0xe8] sm:$0xff]
        %v312 = vld [vmem:[%s203 + $0xf0] sm:$0xff]
        %v313 = vld [vmem:[%s203 + $0xf8] sm:$0xff]
        %v314 = vsel %vm209, %v282, 0.0
        %v315 = vsel %vm209, %v283, 0.0
        %v316 = vadd.f32 %v314, %v315
        %v317 = vsel %vm209, %v284, 0.0
        %v318 = vadd.f32 %v316, %v317
        %v319 = vsel %vm209, %v285, 0.0
        %v320 = vadd.f32 %v318, %v319
        %v321 = vsel %vm209, %v286, 0.0
        %v322 = vadd.f32 %v320, %v321
        %v323 = vsel %vm209, %v287, 0.0
        %v324 = vadd.f32 %v322, %v323
        %v325 = vsel %vm209, %v288, 0.0
        %v326 = vadd.f32 %v324, %v325
        %v327 = vsel %vm209, %v289, 0.0
        %v328 = vadd.f32 %v326, %v327
        %v329 = vsel %vm209, %v290, 0.0
        %v330 = vadd.f32 %v328, %v329
        %v331 = vsel %vm209, %v291, 0.0
        %v332 = vadd.f32 %v330, %v331
        %v333 = vsel %vm209, %v292, 0.0
        %v334 = vadd.f32 %v332, %v333
        %v335 = vsel %vm209, %v293, 0.0
        %v336 = vadd.f32 %v334, %v335
        %v337 = vsel %vm209, %v294, 0.0
        %v338 = vadd.f32 %v336, %v337
        %v339 = vsel %vm209, %v295, 0.0
        %v340 = vadd.f32 %v338, %v339
        %v341 = vsel %vm209, %v296, 0.0
        %v342 = vadd.f32 %v340, %v341
        %v343 = vsel %vm209, %v297, 0.0
        %v344 = vadd.f32 %v342, %v343
        %v345 = vsel %vm209, %v298, 0.0
        %v346 = vadd.f32 %v344, %v345
        %v347 = vsel %vm209, %v299, 0.0
        %v348 = vadd.f32 %v346, %v347
        %v349 = vsel %vm209, %v300, 0.0
        %v350 = vadd.f32 %v348, %v349
        %v351 = vsel %vm209, %v301, 0.0
        %v352 = vadd.f32 %v350, %v351
        %v353 = vsel %vm209, %v302, 0.0
        %v354 = vadd.f32 %v352, %v353
        %v355 = vsel %vm209, %v303, 0.0
        %v356 = vadd.f32 %v354, %v355
        %v357 = vsel %vm209, %v304, 0.0
        %v358 = vadd.f32 %v356, %v357
        %v359 = vsel %vm209, %v305, 0.0
        %v360 = vadd.f32 %v358, %v359
        %v361 = vsel %vm209, %v306, 0.0
        %v362 = vadd.f32 %v360, %v361
        %v363 = vsel %vm209, %v307, 0.0
        %v364 = vadd.f32 %v362, %v363
        %v365 = vsel %vm209, %v308, 0.0
        %v366 = vadd.f32 %v364, %v365
        %v367 = vsel %vm209, %v309, 0.0
        %v368 = vadd.f32 %v366, %v367
        %v369 = vsel %vm209, %v310, 0.0
        %v370 = vadd.f32 %v368, %v369
        %v371 = vsel %vm209, %v311, 0.0
        %v372 = vadd.f32 %v370, %v371
        %v373 = vsel %vm209, %v312, 0.0
        %v374 = vadd.f32 %v372, %v373
        %v375 = vsel %vm209, %v313, 0.0
        %v376 = vadd.f32 %v374, %v375
        %v377 = vrot.slane %v376, 4
        %v378 = vadd.f32 %v376, %v377
        %v379 = vrot.slane %v378, 2
        %v380 = vadd.f32 %v378, %v379
        %v381 = vrot.slane %v380, 1
        %v382 = vadd.f32 %v380, %v381
        %v383 = vrcp.pop 256.0
        %v384 = vmul.f32 256.0, %v383
        %v385 = vsub.f32 1.0, %v384
        %v386 = vmul.f32 %v383, %v385
        %v387 = vadd.f32 %v383, %v386
        %vm388 = vweird.f32 %v383
        %v389 = vsel %vm388, %v383, %v387
        %v390 = vmul.f32 %v382, %v389
        %v391 = vsub.f32 %v282, %v390
        %v392 = vsub.f32 %v283, %v390
        %v393 = vsub.f32 %v284, %v390
        %v394 = vsub.f32 %v285, %v390
        %v395 = vsub.f32 %v286, %v390
        %v396 = vsub.f32 %v287, %v390
        %v397 = vsub.f32 %v288, %v390
        %v398 = vsub.f32 %v289, %v390
        %v399 = vsub.f32 %v290, %v390
        %v400 = vsub.f32 %v291, %v390
        %v401 = vsub.f32 %v292, %v390
        %v402 = vsub.f32 %v293, %v390
        %v403 = vsub.f32 %v294, %v390
        %v404 = vsub.f32 %v295, %v390
        %v405 = vsub.f32 %v296, %v390
        %v406 = vsub.f32 %v297, %v390
        %v407 = vsub.f32 %v298, %v390
        %v408 = vsub.f32 %v299, %v390
        %v409 = vsub.f32 %v300, %v390
        %v410 = vsub.f32 %v301, %v390
        %v411 = vsub.f32 %v302, %v390
        %v412 = vsub.f32 %v303, %v390
        %v413 = vsub.f32 %v304, %v390
        %v414 = vsub.f32 %v305, %v390
        %v415 = vsub.f32 %v306, %v390
        %v416 = vsub.f32 %v307, %v390
        %v417 = vsub.f32 %v308, %v390
        %v418 = vsub.f32 %v309, %v390
        %v419 = vsub.f32 %v310, %v390
        %v420 = vsub.f32 %v311, %v390
        %v421 = vsub.f32 %v312, %v390
        %v422 = vsub.f32 %v313, %v390
        %v423 = vmul.f32 %v391, %v391
        %v424 = vmul.f32 %v392, %v392
        %v425 = vmul.f32 %v393, %v393
        %v426 = vmul.f32 %v394, %v394
        %v427 = vmul.f32 %v395, %v395
        %v428 = vmul.f32 %v396, %v396
        %v429 = vmul.f32 %v397, %v397
        %v430 = vmul.f32 %v398, %v398
        %v431 = vmul.f32 %v399, %v399
        %v432 = vmul.f32 %v400, %v400
        %v433 = vmul.f32 %v401, %v401
        %v434 = vmul.f32 %v402, %v402
        %v435 = vmul.f32 %v403, %v403
        %v436 = vmul.f32 %v404, %v404
        %v437 = vmul.f32 %v405, %v405
        %v438 = vmul.f32 %v406, %v406
        %v439 = vmul.f32 %v407, %v407
        %v440 = vmul.f32 %v408, %v408
        %v441 = vmul.f32 %v409, %v409
        %v442 = vmul.f32 %v410, %v410
        %v443 = vmul.f32 %v411, %v411
        %v444 = vmul.f32 %v412, %v412
        %v445 = vmul.f32 %v413, %v413
        %v446 = vmul.f32 %v414, %v414
        %v447 = vmul.f32 %v415, %v415
        %v448 = vmul.f32 %v416, %v416
        %v449 = vmul.f32 %v417, %v417
        %v450 = vmul.f32 %v418, %v418
        %v451 = vmul.f32 %v419, %v419
        %v452 = vmul.f32 %v420, %v420
        %v453 = vmul.f32 %v421, %v421
        %v454 = vmul.f32 %v422, %v422
        %v455 = vsel %vm209, %v423, 0.0
        %v456 = vsel %vm209, %v424, 0.0
        %v457 = vadd.f32 %v455, %v456
        %v458 = vsel %vm209, %v425, 0.0
        %v459 = vadd.f32 %v457, %v458
        %v460 = vsel %vm209, %v426, 0.0
        %v461 = vadd.f32 %v459, %v460
        %v462 = vsel %vm209, %v427, 0.0
        %v463 = vadd.f32 %v461, %v462
        %v464 = vsel %vm209, %v428, 0.0
        %v465 = vadd.f32 %v463, %v464
        %v466 = vsel %vm209, %v429, 0.0
        %v467 = vadd.f32 %v465, %v466
        %v468 = vsel %vm209, %v430, 0.0
        %v469 = vadd.f32 %v467, %v468
        %v470 = vsel %vm209, %v431, 0.0
        %v471 = vadd.f32 %v469, %v470
        %v472 = vsel %vm209, %v432, 0.0
        %v473 = vadd.f32 %v471, %v472
        %v474 = vsel %vm209, %v433, 0.0
        %v475 = vadd.f32 %v473, %v474
        %v476 = vsel %vm209, %v434, 0.0
        %v477 = vadd.f32 %v475, %v476
        %v478 = vsel %vm209, %v435, 0.0
        %v479 = vadd.f32 %v477, %v478
        %v480 = vsel %vm209, %v436, 0.0
        %v481 = vadd.f32 %v479, %v480
        %v482 = vsel %vm209, %v437, 0.0
        %v483 = vadd.f32 %v481, %v482
        %v484 = vsel %vm209, %v438, 0.0
        %v485 = vadd.f32 %v483, %v484
        %v486 = vsel %vm209, %v439, 0.0
        %v487 = vadd.f32 %v485, %v486
        %v488 = vsel %vm209, %v440, 0.0
        %v489 = vadd.f32 %v487, %v488
        %v490 = vsel %vm209, %v441, 0.0
        %v491 = vadd.f32 %v489, %v490
        %v492 = vsel %vm209, %v442, 0.0
        %v493 = vadd.f32 %v491, %v492
        %v494 = vsel %vm209, %v443, 0.0
        %v495 = vadd.f32 %v493, %v494
        %v496 = vsel %vm209, %v444, 0.0
        %v497 = vadd.f32 %v495, %v496
        %v498 = vsel %vm209, %v445, 0.0
        %v499 = vadd.f32 %v497, %v498
        %v500 = vsel %vm209, %v446, 0.0
        %v501 = vadd.f32 %v499, %v500
        %v502 = vsel %vm209, %v447, 0.0
        %v503 = vadd.f32 %v501, %v502
        %v504 = vsel %vm209, %v448, 0.0
        %v505 = vadd.f32 %v503, %v504
        %v506 = vsel %vm209, %v449, 0.0
        %v507 = vadd.f32 %v505, %v506
        %v508 = vsel %vm209, %v450, 0.0
        %v509 = vadd.f32 %v507, %v508
        %v510 = vsel %vm209, %v451, 0.0
        %v511 = vadd.f32 %v509, %v510
        %v512 = vsel %vm209, %v452, 0.0
        %v513 = vadd.f32 %v511, %v512
        %v514 = vsel %vm209, %v453, 0.0
        %v515 = vadd.f32 %v513, %v514
        %v516 = vsel %vm209, %v454, 0.0
        %v517 = vadd.f32 %v515, %v516
        %v518 = vrot.slane %v517, 4
        %v519 = vadd.f32 %v517, %v518
        %v520 = vrot.slane %v519, 2
        %v521 = vadd.f32 %v519, %v520
        %v522 = vrot.slane %v521, 1
        %v523 = vadd.f32 %v521, %v522
        %v524 = vmul.f32 %v523, %v389
        %v525 = vadd.f32 %v524, 1e-05
        %v526 = vrsqrt.pop %v525
        %v527 = vmul.f32 %v526, %v525
        %v528 = vmul.f32 %v527, %v526
        %v529 = vmul.f32 0.5, %v528
        %v530 = vsub.f32 1.5, %v529
        %v531 = vmul.f32 %v526, %v530
        %vm532 = vweird.f32 %v525
        %vm533 = vweird.f32 %v526
        %vm534 = vmor %vm532, %vm533
        %v535 = vsel %vm534, %v526, %v531
        %v536 = vmul.f32 %v391, %v535
        %v537 = vmul.f32 %v392, %v535
        %v538 = vmul.f32 %v393, %v535
        %v539 = vmul.f32 %v394, %v535
        %v540 = vmul.f32 %v395, %v535
        %v541 = vmul.f32 %v396, %v535
        %v542 = vmul.f32 %v397, %v535
        %v543 = vmul.f32 %v398, %v535
        %v544 = vmul.f32 %v399, %v535
        %v545 = vmul.f32 %v400, %v535
        %v546 = vmul.f32 %v401, %v535
        %v547 = vmul.f32 %v402, %v535
        %v548 = vmul.f32 %v403, %v535
        %v549 = vmul.f32 %v404, %v535
        %v550 = vmul.f32 %v405, %v535
        %v551 = vmul.f32 %v406, %v535
        %v552 = vmul.f32 %v407, %v535
        %v553 = vmul.f32 %v408, %v535
        %v554 = vmul.f32 %v409, %v535
        %v555 = vmul.f32 %v410, %v535
        %v556 = vmul.f32 %v411, %v535
        %v557 = vmul.f32 %v412, %v535
        %v558 = vmul.f32 %v413, %v535
        %v559 = vmul.f32 %v414, %v535
        %v560 = vmul.f32 %v415, %v535
        %v561 = vmul.f32 %v416, %v535
        %v562 = vmul.f32 %v417, %v535
        %v563 = vmul.f32 %v418, %v535
        %v564 = vmul.f32 %v419, %v535
        %v565 = vmul.f32 %v420, %v535
        %v566 = vmul.f32 %v421, %v535
        %v567 = vmul.f32 %v422, %v535
        %v568 = vmax.f32 %v536, 0.0
        %v569 = vmax.f32 %v537, 0.0
        %v570 = vmax.f32 %v538, 0.0
        %v571 = vmax.f32 %v539, 0.0
        %v572 = vmax.f32 %v540, 0.0
        %v573 = vmax.f32 %v541, 0.0
        %v574 = vmax.f32 %v542, 0.0
        %v575 = vmax.f32 %v543, 0.0
        %v576 = vmax.f32 %v544, 0.0
        %v577 = vmax.f32 %v545, 0.0
        %v578 = vmax.f32 %v546, 0.0
        %v579 = vmax.f32 %v547, 0.0
        %v580 = vmax.f32 %v548, 0.0
        %v581 = vmax.f32 %v549, 0.0
        %v582 = vmax.f32 %v550, 0.0
        %v583 = vmax.f32 %v551, 0.0
        %v584 = vmax.f32 %v552, 0.0
        %v585 = vmax.f32 %v553, 0.0
        %v586 = vmax.f32 %v554, 0.0
        %v587 = vmax.f32 %v555, 0.0
        %v588 = vmax.f32 %v556, 0.0
        %v589 = vmax.f32 %v557, 0.0
        %v590 = vmax.f32 %v558, 0.0
        %v591 = vmax.f32 %v559, 0.0
        %v592 = vmax.f32 %v560, 0.0
        %v593 = vmax.f32 %v561, 0.0
        %v594 = vmax.f32 %v562, 0.0
        %v595 = vmax.f32 %v563, 0.0
        %v596 = vmax.f32 %v564, 0.0
        %v597 = vmax.f32 %v565, 0.0
        %v598 = vmax.f32 %v566, 0.0
        %v599 = vmax.f32 %v567, 0.0
        %s600 = scalar_lea.vmem [#allocation2], 32
        %601 = vst.msk [vmem:[%s600 + $0x8] sm:$0xff] %vm209, %v568
        %602 = vst.msk [vmem:[%s600 + $0x10] sm:$0xff] %vm209, %v569
        %603 = vst.msk [vmem:[%s600 + $0x28] sm:$0xff] %vm209, %v570
        %604 = vst.msk [vmem:[%s600 + $0x30] sm:$0xff] %vm209, %v571
        %605 = vst.msk [vmem:[%s600 + $0x48] sm:$0xff] %vm209, %v572
        %606 = vst.msk [vmem:[%s600 + $0x50] sm:$0xff] %vm209, %v573
        %607 = vst.msk [vmem:[%s600 + $0x68] sm:$0xff] %vm209, %v574
        %608 = vst.msk [vmem:[%s600 + $0x70] sm:$0xff] %vm209, %v575
        %609 = vst.msk [vmem:[%s600 + $0x88] sm:$0xff] %vm209, %v576
        %610 = vst.msk [vmem:[%s600 + $0x90] sm:$0xff] %vm209, %v577
        %611 = vst.msk [vmem:[%s600 + $0xa8] sm:$0xff] %vm209, %v578
        %612 = vst.msk [vmem:[%s600 + $0xb0] sm:$0xff] %vm209, %v579
        %613 = vst.msk [vmem:[%s600 + $0xc8] sm:$0xff] %vm209, %v580
        %614 = vst.msk [vmem:[%s600 + $0xd0] sm:$0xff] %vm209, %v581
        %615 = vst.msk [vmem:[%s600 + $0xe8] sm:$0xff] %vm209, %v582
        %616 = vst.msk [vmem:[%s600 + $0xf0] sm:$0xff] %vm209, %v583
        %617 = vst.msk [vmem:[%s600 + $0x108] sm:$0xff] %vm209, %v584
        %618 = vst.msk [vmem:[%s600 + $0x110] sm:$0xff] %vm209, %v585
        %619 = vst.msk [vmem:[%s600 + $0x128] sm:$0xff] %vm209, %v586
        %620 = vst.msk [vmem:[%s600 + $0x130] sm:$0xff] %vm209, %v587
        %621 = vst.msk [vmem:[%s600 + $0x148] sm:$0xff] %vm209, %v588
        %622 = vst.msk [vmem:[%s600 + $0x150] sm:$0xff] %vm209, %v589
        %623 = vst.msk [vmem:[%s600 + $0x168] sm:$0xff] %vm209, %v590
        %624 = vst.msk [vmem:[%s600 + $0x170] sm:$0xff] %vm209, %v591
        %625 = vst.msk [vmem:[%s600 + $0x188] sm:$0xff] %vm209, %v592
        %626 = vst.msk [vmem:[%s600 + $0x190] sm:$0xff] %vm209, %v593
        %627 = vst.msk [vmem:[%s600 + $0x1a8] sm:$0xff] %vm209, %v594
        %628 = vst.msk [vmem:[%s600 + $0x1b0] sm:$0xff] %vm209, %v595
        %629 = vst.msk [vmem:[%s600 + $0x1c8] sm:$0xff] %vm209, %v596
        %630 = vst.msk [vmem:[%s600 + $0x1d0] sm:$0xff] %vm209, %v597
        %631 = vst.msk [vmem:[%s600 + $0x1e8] sm:$0xff] %vm209, %v598
        %632 = vst.msk [vmem:[%s600 + $0x1f0] sm:$0xff] %vm209, %v599
        %s633 = scalar_lea.vmem [#allocation2], 7
        %v634 = vld [vmem:[%s633] ss:$2 sm:$0xff]
        %s635 = scalar_lea.vmem [#allocation2], 71
        %v636 = vld [vmem:[%s635] ss:$2 sm:$0xff]
        %s637 = scalar_lea.vmem [#allocation2], 135
        %v638 = vld [vmem:[%s637] ss:$2 sm:$0xff]
        %s639 = scalar_lea.vmem [#allocation2], 199
        %v640 = vld [vmem:[%s639] ss:$2 sm:$0xff]
        %s641 = scalar_lea.vmem [#allocation2], 263
        %v642 = vld [vmem:[%s641] ss:$2 sm:$0xff]
        %s643 = scalar_lea.vmem [#allocation2], 327
        %v644 = vld [vmem:[%s643] ss:$2 sm:$0xff]
        %s645 = scalar_lea.vmem [#allocation2], 391
        %v646 = vld [vmem:[%s645] ss:$2 sm:$0xff]
        %s647 = scalar_lea.vmem [#allocation2], 455
        %v648 = vld [vmem:[%s647] ss:$2 sm:$0xff]
        %s649 = scalar_lea.vmem [#allocation2], 8
        %v650 = vld [vmem:[%s649] ss:$2 sm:$0xff]
        %s651 = scalar_lea.vmem [#allocation2], 72
        %v652 = vld [vmem:[%s651] ss:$2 sm:$0xff]
        %s653 = scalar_lea.vmem [#allocation2], 136
        %v654 = vld [vmem:[%s653] ss:$2 sm:$0xff]
        %s655 = scalar_lea.vmem [#allocation2], 200
        %v656 = vld [vmem:[%s655] ss:$2 sm:$0xff]
        %s657 = scalar_lea.vmem [#allocation2], 264
        %v658 = vld [vmem:[%s657] ss:$2 sm:$0xff]
        %s659 = scalar_lea.vmem [#allocation2], 328
        %v660 = vld [vmem:[%s659] ss:$2 sm:$0xff]
        %s661 = scalar_lea.vmem [#allocation2], 392
        %v662 = vld [vmem:[%s661] ss:$2 sm:$0xff]
        %s663 = scalar_lea.vmem [#allocation2], 456
        %v664 = vld [vmem:[%s663] ss:$2 sm:$0xff]
        %s665 = scalar_lea.vmem [#allocation2], 9
        %v666 = vld [vmem:[%s665] ss:$2 sm:$0xff]
        %s667 = scalar_lea.vmem [#allocation2], 73
        %v668 = vld [vmem:[%s667] ss:$2 sm:$0xff]
        %s669 = scalar_lea.vmem [#allocation2], 137
        %v670 = vld [vmem:[%s669] ss:$2 sm:$0xff]
        %s671 = scalar_lea.vmem [#allocation2], 201
        %v672 = vld [vmem:[%s671] ss:$2 sm:$0xff]
        %s673 = scalar_lea.vmem [#allocation2], 265
        %v674 = vld [vmem:[%s673] ss:$2 sm:$0xff]
        %s675 = scalar_lea.vmem [#allocation2], 329
        %v676 = vld [vmem:[%s675] ss:$2 sm:$0xff]
        %s677 = scalar_lea.vmem [#allocation2], 393
        %v678 = vld [vmem:[%s677] ss:$2 sm:$0xff]
        %s679 = scalar_lea.vmem [#allocation2], 457
        %v680 = vld [vmem:[%s679] ss:$2 sm:$0xff]
        %s681 = scalar_lea.vmem %s600, 7 [#allocation2]
        %v682 = vld [vmem:[%s681] ss:$2 sm:$0xff]
        %s683 = scalar_lea.vmem %s600, 71 [#allocation2]
        %v684 = vld [vmem:[%s683] ss:$2 sm:$0xff]
        %s685 = scalar_lea.vmem %s600, 135 [#allocation2]
        %v686 = vld [vmem:[%s685] ss:$2 sm:$0xff]
        %s687 = scalar_lea.vmem %s600, 199 [#allocation2]
        %v688 = vld [vmem:[%s687] ss:$2 sm:$0xff]
        %s689 = scalar_lea.vmem %s600, 263 [#allocation2]
        %v690 = vld [vmem:[%s689] ss:$2 sm:$0xff]
        %s691 = scalar_lea.vmem %s600, 327 [#allocation2]
        %v692 = vld [vmem:[%s691] ss:$2 sm:$0xff]
        %s693 = scalar_lea.vmem %s600, 391 [#allocation2]
        %v694 = vld [vmem:[%s693] ss:$2 sm:$0xff]
        %s695 = scalar_lea.vmem %s600, 455 [#allocation2]
        %v696 = vld [vmem:[%s695] ss:$2 sm:$0xff]
        %s697 = scalar_lea.vmem %s600, 8 [#allocation2]
        %v698 = vld [vmem:[%s697] ss:$2 sm:$0xff]
        %s699 = scalar_lea.vmem %s600, 72 [#allocation2]
        %v700 = vld [vmem:[%s699] ss:$2 sm:$0xff]
        %s701 = scalar_lea.vmem %s600, 136 [#allocation2]
        %v702 = vld [vmem:[%s701] ss:$2 sm:$0xff]
        %s703 = scalar_lea.vmem %s600, 200 [#allocation2]
        %v704 = vld [vmem:[%s703] ss:$2 sm:$0xff]
        %s705 = scalar_lea.vmem %s600, 264 [#allocation2]
        %v706 = vld [vmem:[%s705] ss:$2 sm:$0xff]
        %s707 = scalar_lea.vmem %s600, 328 [#allocation2]
        %v708 = vld [vmem:[%s707] ss:$2 sm:$0xff]
        %s709 = scalar_lea.vmem %s600, 392 [#allocation2]
        %v710 = vld [vmem:[%s709] ss:$2 sm:$0xff]
        %s711 = scalar_lea.vmem %s600, 456 [#allocation2]
        %v712 = vld [vmem:[%s711] ss:$2 sm:$0xff]
        %s713 = scalar_lea.vmem %s600, 9 [#allocation2]
        %v714 = vld [vmem:[%s713] ss:$2 sm:$0xff]
        %s715 = scalar_lea.vmem %s600, 73 [#allocation2]
        %v716 = vld [vmem:[%s715] ss:$2 sm:$0xff]
        %s717 = scalar_lea.vmem %s600, 137 [#allocation2]
        %v718 = vld [vmem:[%s717] ss:$2 sm:$0xff]
        %s719 = scalar_lea.vmem %s600, 201 [#allocation2]
        %v720 = vld [vmem:[%s719] ss:$2 sm:$0xff]
        %s721 = scalar_lea.vmem %s600, 265 [#allocation2]
        %v722 = vld [vmem:[%s721] ss:$2 sm:$0xff]
        %s723 = scalar_lea.vmem %s600, 329 [#allocation2]
        %v724 = vld [vmem:[%s723] ss:$2 sm:$0xff]
        %s725 = scalar_lea.vmem %s600, 393 [#allocation2]
        %v726 = vld [vmem:[%s725] ss:$2 sm:$0xff]
        %s727 = scalar_lea.vmem %s600, 457 [#allocation2]
        %v728 = vld [vmem:[%s727] ss:$2 sm:$0xff]
        %s729 = scalar_lea.vmem [#allocation2], 64
        %s730 = scalar_lea.vmem %s729, 7 [#allocation2]
        %v731 = vld [vmem:[%s730] ss:$2 sm:$0xff]
        %s732 = scalar_lea.vmem %s729, 71 [#allocation2]
        %v733 = vld [vmem:[%s732] ss:$2 sm:$0xff]
        %s734 = scalar_lea.vmem %s729, 135 [#allocation2]
        %v735 = vld [vmem:[%s734] ss:$2 sm:$0xff]
        %s736 = scalar_lea.vmem %s729, 199 [#allocation2]
        %v737 = vld [vmem:[%s736] ss:$2 sm:$0xff]
        %s738 = scalar_lea.vmem %s729, 263 [#allocation2]
        %v739 = vld [vmem:[%s738] ss:$2 sm:$0xff]
        %s740 = scalar_lea.vmem %s729, 327 [#allocation2]
        %v741 = vld [vmem:[%s740] ss:$2 sm:$0xff]
        %s742 = scalar_lea.vmem %s729, 391 [#allocation2]
        %v743 = vld [vmem:[%s742] ss:$2 sm:$0xff]
        %s744 = scalar_lea.vmem %s729, 455 [#allocation2]
        %v745 = vld [vmem:[%s744] ss:$2 sm:$0xff]
        %s746 = scalar_lea.vmem %s729, 8 [#allocation2]
        %v747 = vld [vmem:[%s746] ss:$2 sm:$0xff]
        %s748 = scalar_lea.vmem %s729, 72 [#allocation2]
        %v749 = vld [vmem:[%s748] ss:$2 sm:$0xff]
        %s750 = scalar_lea.vmem %s729, 136 [#allocation2]
        %v751 = vld [vmem:[%s750] ss:$2 sm:$0xff]
        %s752 = scalar_lea.vmem %s729, 200 [#allocation2]
        %v753 = vld [vmem:[%s752] ss:$2 sm:$0xff]
        %s754 = scalar_lea.vmem %s729, 264 [#allocation2]
        %v755 = vld [vmem:[%s754] ss:$2 sm:$0xff]
        %s756 = scalar_lea.vmem %s729, 328 [#allocation2]
        %v757 = vld [vmem:[%s756] ss:$2 sm:$0xff]
        %s758 = scalar_lea.vmem %s729, 392 [#allocation2]
        %v759 = vld [vmem:[%s758] ss:$2 sm:$0xff]
        %s760 = scalar_lea.vmem %s729, 456 [#allocation2]
        %v761 = vld [vmem:[%s760] ss:$2 sm:$0xff]
        %s762 = scalar_lea.vmem %s729, 9 [#allocation2]
        %v763 = vld [vmem:[%s762] ss:$2 sm:$0xff]
        %s764 = scalar_lea.vmem %s729, 73 [#allocation2]
        %v765 = vld [vmem:[%s764] ss:$2 sm:$0xff]
        %s766 = scalar_lea.vmem %s729, 137 [#allocation2]
        %v767 = vld [vmem:[%s766] ss:$2 sm:$0xff]
        %s768 = scalar_lea.vmem %s729, 201 [#allocation2]
        %v769 = vld [vmem:[%s768] ss:$2 sm:$0xff]
        %s770 = scalar_lea.vmem %s729, 265 [#allocation2]
        %v771 = vld [vmem:[%s770] ss:$2 sm:$0xff]
        %s772 = scalar_lea.vmem %s729, 329 [#allocation2]
        %v773 = vld [vmem:[%s772] ss:$2 sm:$0xff]
        %s774 = scalar_lea.vmem %s729, 393 [#allocation2]
        %v775 = vld [vmem:[%s774] ss:$2 sm:$0xff]
        %s776 = scalar_lea.vmem %s729, 457 [#allocation2]
        %v777 = vld [vmem:[%s776] ss:$2 sm:$0xff]
        %786 = vrot.lane.b32.xlu0 %v650, 8
        %v787 = vpop.permute.xlu0 %786
        %788 = vrot.lane.b32.xlu0 %v652, 8
        %v789 = vpop.permute.xlu0 %788
        %790 = vrot.lane.b32.xlu0 %v654, 8
        %v791 = vpop.permute.xlu0 %790
        %792 = vrot.lane.b32.xlu0 %v656, 8
        %v793 = vpop.permute.xlu0 %792
        %794 = vrot.lane.b32.xlu0 %v658, 8
        %v795 = vpop.permute.xlu0 %794
        %796 = vrot.lane.b32.xlu0 %v660, 8
        %v797 = vpop.permute.xlu0 %796
        %798 = vrot.lane.b32.xlu0 %v662, 8
        %v799 = vpop.permute.xlu0 %798
        %800 = vrot.lane.b32.xlu0 %v664, 8
        %v801 = vpop.permute.xlu0 %800
        %818 = vrot.lane.b32.xlu0 %v666, 16
        %v819 = vpop.permute.xlu0 %818
        %820 = vrot.lane.b32.xlu0 %v668, 16
        %v821 = vpop.permute.xlu0 %820
        %822 = vrot.lane.b32.xlu0 %v670, 16
        %v823 = vpop.permute.xlu0 %822
        %824 = vrot.lane.b32.xlu0 %v672, 16
        %v825 = vpop.permute.xlu0 %824
        %826 = vrot.lane.b32.xlu0 %v674, 16
        %v827 = vpop.permute.xlu0 %826
        %828 = vrot.lane.b32.xlu0 %v676, 16
        %v829 = vpop.permute.xlu0 %828
        %830 = vrot.lane.b32.xlu0 %v678, 16
        %v831 = vpop.permute.xlu0 %830
        %832 = vrot.lane.b32.xlu0 %v680, 16
        %v833 = vpop.permute.xlu0 %832
        %850 = vrot.lane.b32.xlu0 %v682, 24
        %v851 = vpop.permute.xlu0 %850
        %852 = vrot.lane.b32.xlu0 %v684, 24
        %v853 = vpop.permute.xlu0 %852
        %854 = vrot.lane.b32.xlu0 %v686, 24
        %v855 = vpop.permute.xlu0 %854
        %856 = vrot.lane.b32.xlu0 %v688, 24
        %v857 = vpop.permute.xlu0 %856
        %858 = vrot.lane.b32.xlu0 %v690, 24
        %v859 = vpop.permute.xlu0 %858
        %860 = vrot.lane.b32.xlu0 %v692, 24
        %v861 = vpop.permute.xlu0 %860
        %862 = vrot.lane.b32.xlu0 %v694, 24
        %v863 = vpop.permute.xlu0 %862
        %864 = vrot.lane.b32.xlu0 %v696, 24
        %v865 = vpop.permute.xlu0 %864
        %882 = vrot.lane.b32.xlu0 %v698, 32
        %v883 = vpop.permute.xlu0 %882
        %884 = vrot.lane.b32.xlu0 %v700, 32
        %v885 = vpop.permute.xlu0 %884
        %886 = vrot.lane.b32.xlu0 %v702, 32
        %v887 = vpop.permute.xlu0 %886
        %888 = vrot.lane.b32.xlu0 %v704, 32
        %v889 = vpop.permute.xlu0 %888
        %890 = vrot.lane.b32.xlu0 %v706, 32
        %v891 = vpop.permute.xlu0 %890
        %892 = vrot.lane.b32.xlu0 %v708, 32
        %v893 = vpop.permute.xlu0 %892
        %894 = vrot.lane.b32.xlu0 %v710, 32
        %v895 = vpop.permute.xlu0 %894
        %896 = vrot.lane.b32.xlu0 %v712, 32
        %v897 = vpop.permute.xlu0 %896
        %914 = vrot.lane.b32.xlu0 %v714, 40
        %v915 = vpop.permute.xlu0 %914
        %916 = vrot.lane.b32.xlu0 %v716, 40
        %v917 = vpop.permute.xlu0 %916
        %918 = vrot.lane.b32.xlu0 %v718, 40
        %v919 = vpop.permute.xlu0 %918
        %920 = vrot.lane.b32.xlu0 %v720, 40
        %v921 = vpop.permute.xlu0 %920
        %922 = vrot.lane.b32.xlu0 %v722, 40
        %v923 = vpop.permute.xlu0 %922
        %924 = vrot.lane.b32.xlu0 %v724, 40
        %v925 = vpop.permute.xlu0 %924
        %926 = vrot.lane.b32.xlu0 %v726, 40
        %v927 = vpop.permute.xlu0 %926
        %928 = vrot.lane.b32.xlu0 %v728, 40
        %v929 = vpop.permute.xlu0 %928
        %946 = vrot.lane.b32.xlu0 %v731, 48
        %v947 = vpop.permute.xlu0 %946
        %948 = vrot.lane.b32.xlu0 %v733, 48
        %v949 = vpop.permute.xlu0 %948
        %950 = vrot.lane.b32.xlu0 %v735, 48
        %v951 = vpop.permute.xlu0 %950
        %952 = vrot.lane.b32.xlu0 %v737, 48
        %v953 = vpop.permute.xlu0 %952
        %954 = vrot.lane.b32.xlu0 %v739, 48
        %v955 = vpop.permute.xlu0 %954
        %956 = vrot.lane.b32.xlu0 %v741, 48
        %v957 = vpop.permute.xlu0 %956
        %958 = vrot.lane.b32.xlu0 %v743, 48
        %v959 = vpop.permute.xlu0 %958
        %960 = vrot.lane.b32.xlu0 %v745, 48
        %v961 = vpop.permute.xlu0 %960
        %978 = vrot.lane.b32.xlu0 %v747, 56
        %v979 = vpop.permute.xlu0 %978
        %980 = vrot.lane.b32.xlu0 %v749, 56
        %v981 = vpop.permute.xlu0 %980
        %982 = vrot.lane.b32.xlu0 %v751, 56
        %v983 = vpop.permute.xlu0 %982
        %984 = vrot.lane.b32.xlu0 %v753, 56
        %v985 = vpop.permute.xlu0 %984
        %986 = vrot.lane.b32.xlu0 %v755, 56
        %v987 = vpop.permute.xlu0 %986
        %988 = vrot.lane.b32.xlu0 %v757, 56
        %v989 = vpop.permute.xlu0 %988
        %990 = vrot.lane.b32.xlu0 %v759, 56
        %v991 = vpop.permute.xlu0 %990
        %992 = vrot.lane.b32.xlu0 %v761, 56
        %v993 = vpop.permute.xlu0 %992
        %1010 = vrot.lane.b32.xlu0 %v763, 64
        %v1011 = vpop.permute.xlu0 %1010
        %1012 = vrot.lane.b32.xlu0 %v765, 64
        %v1013 = vpop.permute.xlu0 %1012
        %1014 = vrot.lane.b32.xlu0 %v767, 64
        %v1015 = vpop.permute.xlu0 %1014
        %1016 = vrot.lane.b32.xlu0 %v769, 64
        %v1017 = vpop.permute.xlu0 %1016
        %1018 = vrot.lane.b32.xlu0 %v771, 64
        %v1019 = vpop.permute.xlu0 %1018
        %1020 = vrot.lane.b32.xlu0 %v773, 64
        %v1021 = vpop.permute.xlu0 %1020
        %1022 = vrot.lane.b32.xlu0 %v775, 64
        %v1023 = vpop.permute.xlu0 %1022
        %1024 = vrot.lane.b32.xlu0 %v777, 64
        %v1025 = vpop.permute.xlu0 %1024
        %v1034 = vsel %vm209, %v634, %v787
        %v1035 = vsel %vm209, %v636, %v789
        %v1036 = vsel %vm209, %v638, %v791
        %v1037 = vsel %vm209, %v640, %v793
        %v1038 = vsel %vm209, %v642, %v795
        %v1039 = vsel %vm209, %v644, %v797
        %v1040 = vsel %vm209, %v646, %v799
        %v1041 = vsel %vm209, %v648, %v801
        %vm1042 = vcmask 130048
        %v1043 = vsel %vm1042, %v1034, %v819
        %v1044 = vsel %vm1042, %v1035, %v821
        %v1045 = vsel %vm1042, %v1036, %v823
        %v1046 = vsel %vm1042, %v1037, %v825
        %v1047 = vsel %vm1042, %v1038, %v827
        %v1048 = vsel %vm1042, %v1039, %v829
        %v1049 = vsel %vm1042, %v1040, %v831
        %v1050 = vsel %vm1042, %v1041, %v833
        %vm1051 = vcmask 195584
        %v1052 = vsel %vm1051, %v1043, %v851
        %v1053 = vsel %vm1051, %v1044, %v853
        %v1054 = vsel %vm1051, %v1045, %v855
        %v1055 = vsel %vm1051, %v1046, %v857
        %v1056 = vsel %vm1051, %v1047, %v859
        %v1057 = vsel %vm1051, %v1048, %v861
        %v1058 = vsel %vm1051, %v1049, %v863
        %v1059 = vsel %vm1051, %v1050, %v865
        %vm1060 = vcmask 261120
        %v1061 = vsel %vm1060, %v1052, %v883
        %v1062 = vsel %vm1060, %v1053, %v885
        %v1063 = vsel %vm1060, %v1054, %v887
        %v1064 = vsel %vm1060, %v1055, %v889
        %v1065 = vsel %vm1060, %v1056, %v891
        %v1066 = vsel %vm1060, %v1057, %v893
        %v1067 = vsel %vm1060, %v1058, %v895
        %v1068 = vsel %vm1060, %v1059, %v897
        %vm1069 = vcmask 326656
        %v1070 = vsel %vm1069, %v1061, %v915
        %v1071 = vsel %vm1069, %v1062, %v917
        %v1072 = vsel %vm1069, %v1063, %v919
        %v1073 = vsel %vm1069, %v1064, %v921
        %v1074 = vsel %vm1069, %v1065, %v923
        %v1075 = vsel %vm1069, %v1066, %v925
        %v1076 = vsel %vm1069, %v1067, %v927
        %v1077 = vsel %vm1069, %v1068, %v929
        %vm1078 = vcmask 392192
        %v1079 = vsel %vm1078, %v1070, %v947
        %v1080 = vsel %vm1078, %v1071, %v949
        %v1081 = vsel %vm1078, %v1072, %v951
        %v1082 = vsel %vm1078, %v1073, %v953
        %v1083 = vsel %vm1078, %v1074, %v955
        %v1084 = vsel %vm1078, %v1075, %v957
        %v1085 = vsel %vm1078, %v1076, %v959
        %v1086 = vsel %vm1078, %v1077, %v961
        %vm1087 = vcmask 457728
        %v1088 = vsel %vm1087, %v1079, %v979
        %v1089 = vsel %vm1087, %v1080, %v981
        %v1090 = vsel %vm1087, %v1081, %v983
        %v1091 = vsel %vm1087, %v1082, %v985
        %v1092 = vsel %vm1087, %v1083, %v987
        %v1093 = vsel %vm1087, %v1084, %v989
        %v1094 = vsel %vm1087, %v1085, %v991
        %v1095 = vsel %vm1087, %v1086, %v993
        %vm1096 = vcmask 523264
        %v1097 = vsel %vm1096, %v1088, %v1011
        %v1098 = vsel %vm1096, %v1089, %v1013
        %v1099 = vsel %vm1096, %v1090, %v1015
        %v1100 = vsel %vm1096, %v1091, %v1017
        %v1101 = vsel %vm1096, %v1092, %v1019
        %v1102 = vsel %vm1096, %v1093, %v1021
        %v1103 = vsel %vm1096, %v1094, %v1023
        %v1104 = vsel %vm1096, %v1095, %v1025
        %v1105 = vld [vmem:[%s1] sm:$0xff]
        %v1106 = vld [vmem:[%s1 + $0x8] sm:$0xff]
        %v1107 = vld [vmem:[%s1 + $0x10] sm:$0xff]
        %v1108 = vld [vmem:[%s1 + $0x18] sm:$0xff]
        %v1109 = vld [vmem:[%s1 + $0x20] sm:$0xff]
        %v1110 = vld [vmem:[%s1 + $0x28] sm:$0xff]
        %v1111 = vld [vmem:[%s1 + $0x30] sm:$0xff]
        %v1112 = vld [vmem:[%s1 + $0x38] sm:$0xff]
        %v1113 = vld [vmem:[%s1 + $0x40] sm:$0xff]
        %vm1114 = vcmask 588800
        %v1116 = vsel %vm1114, %v1097, 0
        %v1119 = vsel %vm1114, %v1098, 0
        %v1122 = vsel %vm1114, %v1099, 0
        %v1125 = vsel %vm1114, %v1100, 0
        %v1128 = vsel %vm1114, %v1101, 0
        %v1131 = vsel %vm1114, %v1102, 0
        %v1134 = vsel %vm1114, %v1103, 0
        %v1137 = vsel %vm1114, %v1104, 0
        %1139 = vmatpush.msra.mxu0 0.0
        %1140 = vmatpush.msra.mxu0 0.0
        %1141 = vmatpush.msra.mxu0 0.0
        %1142 = vmatpush.msra.mxu0 0.0
        %1143 = vmatpush.msra.mxu0 0.0
        %1144 = vmatpush.msra.mxu0 0.0
        %1145 = vmatpush.msra.mxu0 0.0
        %1146 = vmatpush.msra.mxu0 %v1113
        %1147 = vmatpush.msra.mxu0 %v1112
        %1148 = vmatpush.msra.mxu0 %v1111
        %1149 = vmatpush.msra.mxu0 %v1110
        %1150 = vmatpush.msra.mxu0 %v1109
        %1151 = vmatpush.msra.mxu0 %v1108
        %1152 = vmatpush.msra.mxu0 %v1107
        %1153 = vmatpush.msra.mxu0 %v1106
        %1154 = vmatpush.msra.mxu0 %v1105
        %1155 = vmatmul.f32.gmra.mxu0 %v1116
        %v1156 = vpop.f32.mrf.mxu0
        %v1157 = vadd.f32 0.0, %v1156
        %1158 = vmatmul.f32.gmra.mxu0 %v1119
        %v1159 = vpop.f32.mrf.mxu0
        %v1160 = vadd.f32 0.0, %v1159
        %1161 = vmatmul.f32.gmra.mxu0 %v1122
        %v1162 = vpop.f32.mrf.mxu0
        %v1163 = vadd.f32 0.0, %v1162
        %1164 = vmatmul.f32.gmra.mxu0 %v1125
        %v1165 = vpop.f32.mrf.mxu0
        %v1166 = vadd.f32 0.0, %v1165
        %1167 = vmatmul.f32.gmra.mxu0 %v1128
        %v1168 = vpop.f32.mrf.mxu0
        %v1169 = vadd.f32 0.0, %v1168
        %1170 = vmatmul.f32.gmra.mxu0 %v1131
        %v1171 = vpop.f32.mrf.mxu0
        %v1172 = vadd.f32 0.0, %v1171
        %1173 = vmatmul.f32.gmra.mxu0 %v1134
        %v1174 = vpop.f32.mrf.mxu0
        %v1175 = vadd.f32 0.0, %v1174
        %1176 = vmatmul.f32.gmra.mxu0 %v1137
        %v1177 = vpop.f32.mrf.mxu0
        %v1178 = vadd.f32 0.0, %v1177
        %1179 = vdwg.mxu0
        %v1180 = vld [vmem:[%s2] sm:$0xff]
        %v1181 = vsel %vm209, %v698, 0
        %v1183 = vsel %vm209, %v700, 0
        %v1185 = vsel %vm209, %v702, 0
        %v1187 = vsel %vm209, %v704, 0
        %v1189 = vsel %vm209, %v706, 0
        %v1191 = vsel %vm209, %v708, 0
        %v1193 = vsel %vm209, %v710, 0
        %v1195 = vsel %vm209, %v712, 0
        %1197 = vmatpush.msra.mxu0 0.0
        %1198 = vmatpush.msra.mxu0 0.0
        %1199 = vmatpush.msra.mxu0 0.0
        %1200 = vmatpush.msra.mxu0 0.0
        %1201 = vmatpush.msra.mxu0 0.0
        %1202 = vmatpush.msra.mxu0 0.0
        %1203 = vmatpush.msra.mxu0 0.0
        %1204 = vmatpush.msra.mxu0 0.0
        %1205 = vmatpush.msra.mxu0 0.0
        %1206 = vmatpush.msra.mxu0 0.0
        %1207 = vmatpush.msra.mxu0 0.0
        %1208 = vmatpush.msra.mxu0 0.0
        %1209 = vmatpush.msra.mxu0 0.0
        %1210 = vmatpush.msra.mxu0 0.0
        %1211 = vmatpush.msra.mxu0 0.0
        %1212 = vmatpush.msra.mxu0 %v1180
        %1213 = vmatmul.f32.gmra.mxu0 %v1181
        %v1214 = vpop.f32.mrf.mxu0
        %v1215 = vadd.f32 0.0, %v1214
        %1216 = vmatmul.f32.gmra.mxu0 %v1183
        %v1217 = vpop.f32.mrf.mxu0
        %v1218 = vadd.f32 0.0, %v1217
        %1219 = vmatmul.f32.gmra.mxu0 %v1185
        %v1220 = vpop.f32.mrf.mxu0
        %v1221 = vadd.f32 0.0, %v1220
        %1222 = vmatmul.f32.gmra.mxu0 %v1187
        %v1223 = vpop.f32.mrf.mxu0
        %v1224 = vadd.f32 0.0, %v1223
        %1225 = vmatmul.f32.gmra.mxu0 %v1189
        %v1226 = vpop.f32.mrf.mxu0
        %v1227 = vadd.f32 0.0, %v1226
        %1228 = vmatmul.f32.gmra.mxu0 %v1191
        %v1229 = vpop.f32.mrf.mxu0
        %v1230 = vadd.f32 0.0, %v1229
        %1231 = vmatmul.f32.gmra.mxu0 %v1193
        %v1232 = vpop.f32.mrf.mxu0
        %v1233 = vadd.f32 0.0, %v1232
        %1234 = vmatmul.f32.gmra.mxu0 %v1195
        %v1235 = vpop.f32.mrf.mxu0
        %v1236 = vadd.f32 0.0, %v1235
        %1237 = vdwg.mxu0
        %1238 = vst.msk [vmem:[%s191] sm:$0xff] %vm1042, %v1157
        %1239 = vst.msk [vmem:[%s191 + $0x8] sm:$0xff] %vm1042, %v1160
        %1240 = vst.msk [vmem:[%s191 + $0x10] sm:$0xff] %vm1042, %v1163
        %1241 = vst.msk [vmem:[%s191 + $0x18] sm:$0xff] %vm1042, %v1166
        %1242 = vst.msk [vmem:[%s191 + $0x20] sm:$0xff] %vm1042, %v1169
        %1243 = vst.msk [vmem:[%s191 + $0x28] sm:$0xff] %vm1042, %v1172
        %1244 = vst.msk [vmem:[%s191 + $0x30] sm:$0xff] %vm1042, %v1175
        %1245 = vst.msk [vmem:[%s191 + $0x38] sm:$0xff] %vm1042, %v1178
        %1246 = vst.msk [vmem:[%s208] sm:$0xff] %vm1042, %v1215
        %1247 = vst.msk [vmem:[%s208 + $0x8] sm:$0xff] %vm1042, %v1218
        %1248 = vst.msk [vmem:[%s208 + $0x10] sm:$0xff] %vm1042, %v1221
        %1249 = vst.msk [vmem:[%s208 + $0x18] sm:$0xff] %vm1042, %v1224
        %1250 = vst.msk [vmem:[%s208 + $0x20] sm:$0xff] %vm1042, %v1227
        %1251 = vst.msk [vmem:[%s208 + $0x28] sm:$0xff] %vm1042, %v1230
        %1252 = vst.msk [vmem:[%s208 + $0x30] sm:$0xff] %vm1042, %v1233
        %1253 = vst.msk [vmem:[%s208 + $0x38] sm:$0xff] %vm1042, %v1236
        %s1254 = sand.u32 %s95, 1
        %s1255 = scalar_lea.sflag [#allocation4], %s1254
        %s1256 = sand.u32 %s95, 1
        %s1257 = smul.addr %s1256, 64
        %s1258 = scalar_lea.vmem [#allocation3], %s1257
        %p1259 = scmp.lt.s32.totalorder %s19, 1
        %s1260 = scalar_select %p1259, %s19, 1
        %s1261 = smul.addr %s1260, 8
        %s1262 = smul.addr %s1261, 8
        %s1263 = scalar_lea.vmem %s4, %s1262
        // Predicated region
        $region33: #{tpu_custom_call.1} parent=31 // pred_check
          %p1264 = pneg %p105
        $region34: #{tpu_custom_call.1} parent=31 // pred_check_branch
          %1266 = sbr.rel (%p1264) target = $region36
        $region35: #{tpu_custom_call.1} parent=31 // pred_region
          %1268 = vsyncadd %s1255, 0
          %s1269 = smul.addr %s19, 8
          %s1270 = smul.addr %s1269, 8
          %s1271 = scalar_lea.hbm %s3, %s1270
          %s1272 = sshll.u32 %s1258, 4
          %s1273 = int_to_ptr.vmem [resolvable:$true] %s1272
          %s1274 = sshll.u32 %s1271, 4
          %s1275 = int_to_ptr.hbm [resolvable:$true] %s1274
          %1280 = dma.vmem_to_hbm [thread:$0]  %s1273, 1024, %s1275, %s1255, 128, 128, 8
        $region36: #{tpu_custom_call.1} parent=31 // pred_fallthru
          _
        // Predicated region
        $region37: #{tpu_custom_call.1} parent=31 // pred_check
          %p1281 = pneg %p131
        $region38: #{tpu_custom_call.1} parent=31 // pred_check_branch
          %1283 = sbr.rel (%p1281) target = $region40
        $region39: #{tpu_custom_call.1} parent=31 // pred_region
          _
        $region40: #{tpu_custom_call.1} parent=31 // pred_fallthru
          _
      $region32: #{tpu_custom_call.1} parent=5 // pred_fallthru
        _
      %p1284 = scmp.le.s32.totalorder 2, %s14
      // Predicated region
      $region41: #{tpu_custom_call.1} parent=5 // pred_check
        %p1285 = pneg %p1284
      $region42: #{tpu_custom_call.1} parent=5 // pred_check_branch
        %1287 = sbr.rel (%p1285) target = $region44
      $region43: #{tpu_custom_call.1} parent=5 // pred_region
        %s1288 = ssub.s32 %s14, 2
        // Predicated region
        $region45: #{tpu_custom_call.1} parent=43 // pred_check
          %p1289 = pneg %p111
        $region46: #{tpu_custom_call.1} parent=43 // pred_check_branch
          %1291 = sbr.rel (%p1289) target = $region48
        $region47: #{tpu_custom_call.1} parent=43 // pred_region
          %s1292 = sand.u32 %s96, 1
          %s1293 = scalar_lea.sflag [#allocation4], %s1292
          %s1294 = sand.u32 %s96, 1
          %s1295 = smul.addr %s1294, 64
          %s1296 = scalar_lea.vmem [#allocation3], %s1295
          %1298 = dma.done %s1293, 1024
        $region48: #{tpu_custom_call.1} parent=43 // pred_fallthru
          _
        // Predicated region
        $region49: #{tpu_custom_call.1} parent=43 // pred_check
          %p1299 = pneg %p137
        $region50: #{tpu_custom_call.1} parent=43 // pred_check_branch
          %1301 = sbr.rel (%p1299) target = $region52
        $region51: #{tpu_custom_call.1} parent=43 // pred_region
          %p1302 = scmp.lt.s32.totalorder %s20, 1
          %s1303 = scalar_select %p1302, %s20, 1
          %s1304 = smul.addr %s1303, 8
          %s1305 = smul.addr %s1304, 8
          %s1306 = scalar_lea.vmem %s4, %s1305
        $region52: #{tpu_custom_call.1} parent=43 // pred_fallthru
          _
      $region44: #{tpu_custom_call.1} parent=5 // pred_fallthru
        _
    $region6: #{tpu_custom_call.1} parent=1 // loop_footer
      %s18 = sadd.s32 1, %s14
    $region7: #{tpu_custom_call.1} parent=1 // loop_footer_branch
      %13 = sbr.rel target = $region3
    $region8: #{tpu_custom_call.1} parent=1 // loop_exit
      _
    %1307 = vsyncpa [#allocation4], 1
    %s1308 = scalar_lea.sflag [#allocation4], 1
    %1309 = vsyncpa %s1308, 1

</llo_original>
